<compile_context>
chip_gen: v6e
topology: v6e:2x2x1
jax: 0.10.0
libtpu: 0.0.40
codegen_flags: <defaults>
</compile_context>

<pallas_src>
import jax
import jax.numpy as jnp
from jax.experimental import pallas as pl
from jax.experimental.pallas import tpu as pltpu


def _conv_ps_kernel(body_ref, halo0_ref, halo1_ref, w_ref, o_ref, win_ref):
    """3x3 SAME conv (no bias) on one row tile, pixel-shuffle-ordered output.

    body_ref : (1, tH, W+2, Cin)  padded rows [r*tH, r*tH+tH)
    halo0_ref: (1, 1,  W+2, Cin)  padded row   r*tH+tH
    halo1_ref: (1, 1,  W+2, Cin)  padded row   r*tH+tH+1
    w_ref    : (9*Cin, Cout)      HWIO flattened, columns permuted to (i, j, c)
    o_ref    : (1, 2, tH, W, Cout//2)  [row-parity, row, col, j*Cf + c]
    win_ref  : VMEM scratch (tH+2, W+2, Cin)
    """
    tH = body_ref.shape[1]
    Wp2, Cin = body_ref.shape[2], body_ref.shape[3]
    W = Wp2 - 2
    Cout = w_ref.shape[1]
    Chalf = Cout // 2                      # = n_feat = channels per parity plane

    # Assemble the haloed window for this row tile in VMEM.
    win_ref[pl.ds(0, tH), :, :] = body_ref[0]
    win_ref[pl.ds(tH, 1), :, :] = halo0_ref[0]
    win_ref[pl.ds(tH + 1, 1), :, :] = halo1_ref[0]
    win = win_ref[...]                     # (tH+2, W+2, Cin)

    # im2col: 9 shifted patches -> one fat MXU matmul, f32 accumulation.
    patches = []
    for dy in range(3):
        for dx in range(3):
            patches.append(win[dy:dy + tH, dx:dx + W, :].reshape(tH * W, Cin))
    lhs = jnp.concatenate(patches, axis=-1)                  # (tH*W, 9*Cin)
    acc = jnp.dot(lhs, w_ref[...], preferred_element_type=jnp.float32)

    # Columns are ordered (i, j, c): first half -> even output rows (i=0),
    # second half -> odd output rows (i=1).  Within each half the lane order
    # (j*Cf + c) is already the final (pixel-shuffled) layout.
    even = acc[:, :Chalf].reshape(tH, W, Chalf)
    odd = acc[:, Chalf:].reshape(tH, W, Chalf)
    o_ref[0, 0] = even.astype(o_ref.dtype)
    o_ref[0, 1] = odd.astype(o_ref.dtype)


def _pick_row_tile(H, W, Cin, Cout, itemsize, vmem_budget_bytes=6 << 20):
    """Largest divisor of H whose per-step working set fits the budget,
    preferring >=2 row tiles per image (pipeline depth) and sublane-friendly
    multiples of 8.  Budget is conservative so double-buffered in/out tiles
    stay well under v7x's 64 MiB physical VMEM."""
    divisors = [t for t in range(H, 0, -1) if H % t == 0]

    def tile_bytes(t):
        win = (t + 2) * (W + 2) * Cin * itemsize      # body block + scratch copy
        col = t * W * 9 * Cin * itemsize              # im2col operand
        acc = t * W * Cout * 4                        # f32 accumulator
        out = t * W * Cout * itemsize                 # output block
        return 2 * win + col + acc + out

    preds = (
        lambda t: tile_bytes(t) <= vmem_budget_bytes and H // t >= 2 and t % 8 == 0,
        lambda t: tile_bytes(t) <= vmem_budget_bytes and H // t >= 2 and t % 2 == 0,
        lambda t: tile_bytes(t) <= vmem_budget_bytes and t % 2 == 0,
        lambda t: tile_bytes(t) <= vmem_budget_bytes,
    )
    for pred in preds:
        for t in divisors:
            if pred(t):
                return t
    return divisors[-1]


def upsample_forward(x_nchw, w_oihw, *, compute_dtype=None, row_tile=None):
    """Upsample.forward: Conv2d(n_feat, 2*n_feat, 3, padding=1, bias=False)
    followed by PixelShuffle(2).

    x_nchw: (N, n_feat, H, W);  w_oihw: (2*n_feat, n_feat, 3, 3)
    returns (N, n_feat // 2, 2*H, 2*W) in NCHW, matching the torch module.
    """
    N, Cin, H, W = x_nchw.shape
    Cout = w_oihw.shape[0]
    assert w_oihw.shape == (Cout, Cin, 3, 3)
    assert Cout % 4 == 0, "PixelShuffle(2) needs conv output channels % 4 == 0"
    Cf = Cout // 4                          # final channel count (n_feat // 2)
    Chalf = 2 * Cf                          # channels per row-parity plane

    if compute_dtype is not None:           # bf16 MXU feeding on v6e/v7x
        x_nchw = x_nchw.astype(compute_dtype)
        w_oihw = w_oihw.astype(compute_dtype)
    dtype = x_nchw.dtype

    # Weights: OIHW -> (9*Cin, Cout), columns permuted to (i, j, c) so the
    # pixel shuffle is a pure relabeling of matmul columns (fused into store).
    w_mat = jnp.transpose(w_oihw, (2, 3, 1, 0)).reshape(9 * Cin, Cout)
    perm = [(p % Cf) * 4 + (p // (2 * Cf)) * 2 + ((p // Cf) % 2)
            for p in range(Cout)]
    w_perm = w_mat[:, jnp.asarray(perm)]

    # Activations: NCHW -> NHWC with a 1-pixel zero halo (fused into one HBM
    # pass by XLA under jit; PyTorch layout contract forces the NCHW boundary).
    x_pad = jnp.pad(jnp.transpose(x_nchw, (0, 2, 3, 1)),
                    ((0, 0), (1, 1), (1, 1), (0, 0)))

    tH = row_tile if row_tile is not None else _pick_row_tile(
        H, W, Cin, Cout, jnp.dtype(dtype).itemsize)
    assert H % tH == 0
    grid = (N, H // tH)

    z = pl.pallas_call(
        _conv_ps_kernel,
        out_shape=jax.ShapeDtypeStruct((N, 2, H, W, Chalf), dtype),
        grid=grid,
        in_specs=[
            # body rows [r*tH, r*tH + tH) of the padded input
            pl.BlockSpec((1, tH, W + 2, Cin), lambda n, r: (n, r, 0, 0)),
            # two 1-row bottom-halo blocks (row-block size 1 => element index)
            pl.BlockSpec((1, 1, W + 2, Cin),
                         lambda n, r: (n, r * tH + tH, 0, 0)),
            pl.BlockSpec((1, 1, W + 2, Cin),
                         lambda n, r: (n, r * tH + tH + 1, 0, 0)),
            # weights: grid-invariant (tiny vs. activation tiles; kept resident)
            pl.BlockSpec((9 * Cin, Cout), lambda n, r: (0, 0)),
        ],
        out_specs=pl.BlockSpec((1, 2, tH, W, Chalf),
                               lambda n, r: (n, 0, r, 0, 0)),
        scratch_shapes=[pltpu.VMEM((tH + 2, W + 2, Cin), dtype)],
        compiler_params=pltpu.CompilerParams(
            dimension_semantics=("parallel", "parallel"),
            vmem_limit_bytes=32 * 1024 * 1024),
    )(x_pad, x_pad, x_pad, w_perm)

    # Single fused rearrange back to PyTorch NCHW:
    #   z[n, i, h, w, j*Cf + c] == PixelShuffle output [n, c, 2h+i, 2w+j]
    z6 = z.reshape(N, 2, H, W, 2, Cf)
    out = jnp.transpose(z6, (0, 5, 2, 1, 3, 4)).reshape(N, Cf, 2 * H, 2 * W)
    return out


def _pixel_shuffle_nchw(x, r):
    """Reference PixelShuffle(r), PyTorch semantics (used only for checking)."""
    N, Crr, H, W = x.shape
    C = Crr // (r * r)
    x = x.reshape(N, C, r, r, H, W)
    x = jnp.transpose(x, (0, 1, 4, 2, 5, 3))
    return x.reshape(N, C, H * r, W * r)


if __name__ == "__main__":
    key = jax.random.PRNGKey(0)
    k_x, k_w = jax.random.split(key)

    N, n_feat, H, W = 2, 4, 16, 16
    x = jax.random.normal(k_x, (N, n_feat, H, W), dtype=jnp.float32)
    # Conv2d(n_feat, 2*n_feat, k=3, bias=False) weight, deterministic init.
    w = jax.random.normal(k_w, (2 * n_feat, n_feat, 3, 3),
                          dtype=jnp.float32) * 0.1

    fwd = jax.jit(upsample_forward, static_argnames=("compute_dtype", "row_tile"))

    out = jax.block_until_ready(fwd(x, w))
    assert out.shape == (N, n_feat // 2, 2 * H, 2 * W), out.shape

    # Reference: XLA conv + pixel shuffle.
    ref_conv = jax.lax.conv_general_dilated(
        x, w, window_strides=(1, 1), padding="SAME",
        dimension_numbers=("NCHW", "OIHW", "NCHW"))
    ref = _pixel_shuffle_nchw(ref_conv, 2)
    err = float(jnp.max(jnp.abs(out - ref)))
    assert jnp.allclose(out, ref, atol=1e-3, rtol=1e-3), err

    # bf16 MXU-feeding path (v6e/v7x): f32 accumulation, looser tolerance.
    out_bf16 = jax.block_until_ready(fwd(x, w, compute_dtype=jnp.bfloat16))
    assert out_bf16.shape == out.shape
    assert jnp.allclose(out_bf16.astype(jnp.float32), ref, atol=0.1, rtol=0.1)

    print("KERNEL_OK")
</pallas_src>

<mosaic_0001>
module attributes {stable_mosaic.version = 11 : i64} {
  func.func @_conv_ps_kernel(%arg0: i32, %arg1: i32, %arg2: memref<1x8x18x4xf32, #tpu.memory_space<vmem>>, %arg3: memref<1x1x18x4xf32, #tpu.memory_space<vmem>>, %arg4: memref<1x1x18x4xf32, #tpu.memory_space<vmem>>, %arg5: memref<36x8xf32, #tpu.memory_space<vmem>>, %arg6: memref<1x2x8x16x4xf32, #tpu.memory_space<vmem>>, %arg7: memref<10x18x4xf32, #tpu.memory_space<vmem>>) attributes {dimension_semantics = [#tpu.dimension_semantics<parallel>, #tpu.dimension_semantics<parallel>], iteration_bounds = array<i64: 2, 2>, scalar_prefetch = 0 : i64, scratch_operands = 1 : i64, tpu.core_type = #tpu.core_type<tc>, window_params = [{transform_indices = @transform_0, window_bounds = array<i64: 1, 8, 18, 4>}, {transform_indices = @transform_1, window_bounds = array<i64: 1, 1, 18, 4>}, {transform_indices = @transform_2, window_bounds = array<i64: 1, 1, 18, 4>}, {pipeline_mode = #tpu.pipeline_mode<synchronous>, transform_indices = @transform_3, window_bounds = array<i64: 36, 8>}, {transform_indices = @transform_4, window_bounds = array<i64: 1, 2, 8, 16, 4>}]} {
    %c0 = arith.constant 0 : index
    %c0_0 = arith.constant 0 : index
    %c0_1 = arith.constant 0 : index
    %c0_2 = arith.constant 0 : index
    %0 = vector.load %arg2[%c0, %c0_0, %c0_1, %c0_2] : memref<1x8x18x4xf32, #tpu.memory_space<vmem>>, vector<1x8x18x4xf32>
    %1 = vector.shape_cast %0 : vector<1x8x18x4xf32> to vector<8x18x4xf32>
    %c0_3 = arith.constant 0 : index
    %c0_4 = arith.constant 0 : index
    %c0_5 = arith.constant 0 : index
    %2 = vector.load %arg7[%c0_3, %c0_4, %c0_5] : memref<10x18x4xf32, #tpu.memory_space<vmem>>, vector<8x18x4xf32>
    tpu.vector_store %arg7[%c0_3, %c0_4, %c0_5], %1 {strides = array<i32>} : memref<10x18x4xf32, #tpu.memory_space<vmem>>, vector<8x18x4xf32>,
    %c0_6 = arith.constant 0 : index
    %c0_7 = arith.constant 0 : index
    %c0_8 = arith.constant 0 : index
    %c0_9 = arith.constant 0 : index
    %3 = vector.load %arg3[%c0_6, %c0_7, %c0_8, %c0_9] : memref<1x1x18x4xf32, #tpu.memory_space<vmem>>, vector<1x1x18x4xf32>
    %4 = vector.shape_cast %3 : vector<1x1x18x4xf32> to vector<1x18x4xf32>
    %c8 = arith.constant 8 : index
    %c0_10 = arith.constant 0 : index
    %c0_11 = arith.constant 0 : index
    %5 = vector.load %arg7[%c8, %c0_10, %c0_11] : memref<10x18x4xf32, #tpu.memory_space<vmem>>, vector<1x18x4xf32>
    tpu.vector_store %arg7[%c8, %c0_10, %c0_11], %4 {strides = array<i32>} : memref<10x18x4xf32, #tpu.memory_space<vmem>>, vector<1x18x4xf32>,
    %c0_12 = arith.constant 0 : index
    %c0_13 = arith.constant 0 : index
    %c0_14 = arith.constant 0 : index
    %c0_15 = arith.constant 0 : index
    %6 = vector.load %arg4[%c0_12, %c0_13, %c0_14, %c0_15] : memref<1x1x18x4xf32, #tpu.memory_space<vmem>>, vector<1x1x18x4xf32>
    %7 = vector.shape_cast %6 : vector<1x1x18x4xf32> to vector<1x18x4xf32>
    %c9 = arith.constant 9 : index
    %c0_16 = arith.constant 0 : index
    %c0_17 = arith.constant 0 : index
    %8 = vector.load %arg7[%c9, %c0_16, %c0_17] : memref<10x18x4xf32, #tpu.memory_space<vmem>>, vector<1x18x4xf32>
    tpu.vector_store %arg7[%c9, %c0_16, %c0_17], %7 {strides = array<i32>} : memref<10x18x4xf32, #tpu.memory_space<vmem>>, vector<1x18x4xf32>,
    %c0_18 = arith.constant 0 : index
    %c0_19 = arith.constant 0 : index
    %c0_20 = arith.constant 0 : index
    %9 = vector.load %arg7[%c0_18, %c0_19, %c0_20] : memref<10x18x4xf32, #tpu.memory_space<vmem>>, vector<10x18x4xf32>
    %10 = vector.extract_strided_slice %9 {offsets = [0, 0, 0], sizes = [8, 16, 4], strides = [1, 1, 1]} : vector<10x18x4xf32> to vector<8x16x4xf32>
    %11 = vector.shape_cast %10 : vector<8x16x4xf32> to vector<128x4xf32>
    %12 = vector.extract_strided_slice %9 {offsets = [0, 1, 0], sizes = [8, 16, 4], strides = [1, 1, 1]} : vector<10x18x4xf32> to vector<8x16x4xf32>
    %13 = vector.shape_cast %12 : vector<8x16x4xf32> to vector<128x4xf32>
    %14 = vector.extract_strided_slice %9 {offsets = [0, 2, 0], sizes = [8, 16, 4], strides = [1, 1, 1]} : vector<10x18x4xf32> to vector<8x16x4xf32>
    %15 = vector.shape_cast %14 : vector<8x16x4xf32> to vector<128x4xf32>
    %16 = vector.extract_strided_slice %9 {offsets = [1, 0, 0], sizes = [8, 16, 4], strides = [1, 1, 1]} : vector<10x18x4xf32> to vector<8x16x4xf32>
    %17 = vector.shape_cast %16 : vector<8x16x4xf32> to vector<128x4xf32>
    %18 = vector.extract_strided_slice %9 {offsets = [1, 1, 0], sizes = [8, 16, 4], strides = [1, 1, 1]} : vector<10x18x4xf32> to vector<8x16x4xf32>
    %19 = vector.shape_cast %18 : vector<8x16x4xf32> to vector<128x4xf32>
    %20 = vector.extract_strided_slice %9 {offsets = [1, 2, 0], sizes = [8, 16, 4], strides = [1, 1, 1]} : vector<10x18x4xf32> to vector<8x16x4xf32>
    %21 = vector.shape_cast %20 : vector<8x16x4xf32> to vector<128x4xf32>
    %22 = vector.extract_strided_slice %9 {offsets = [2, 0, 0], sizes = [8, 16, 4], strides = [1, 1, 1]} : vector<10x18x4xf32> to vector<8x16x4xf32>
    %23 = vector.shape_cast %22 : vector<8x16x4xf32> to vector<128x4xf32>
    %24 = vector.extract_strided_slice %9 {offsets = [2, 1, 0], sizes = [8, 16, 4], strides = [1, 1, 1]} : vector<10x18x4xf32> to vector<8x16x4xf32>
    %25 = vector.shape_cast %24 : vector<8x16x4xf32> to vector<128x4xf32>
    %26 = vector.extract_strided_slice %9 {offsets = [2, 2, 0], sizes = [8, 16, 4], strides = [1, 1, 1]} : vector<10x18x4xf32> to vector<8x16x4xf32>
    %27 = vector.shape_cast %26 : vector<8x16x4xf32> to vector<128x4xf32>
    %28 = tpu.concatenate %11, %13, %15, %17, %19, %21, %23, %25, %27 in 1 : vector<128x4xf32>, vector<128x4xf32>, vector<128x4xf32>, vector<128x4xf32>, vector<128x4xf32>, vector<128x4xf32>, vector<128x4xf32>, vector<128x4xf32>, vector<128x4xf32> -> vector<128x36xf32>
    %c0_21 = arith.constant 0 : index
    %c0_22 = arith.constant 0 : index
    %29 = vector.load %arg5[%c0_21, %c0_22] : memref<36x8xf32, #tpu.memory_space<vmem>>, vector<36x8xf32>
    %cst = arith.constant dense<0.000000e+00> : vector<128x8xf32>
    %30 = tpu.matmul %28, %29, %cst {dimension_numbers = #tpu.dot_dimension_numbers<[1], [0], [0], [1], [0, 0, 1, 1], [], []>} : vector<128x36xf32>, vector<36x8xf32>, vector<128x8xf32> -> vector<128x8xf32>
    %31 = vector.extract_strided_slice %30 {offsets = [0, 0], sizes = [128, 4], strides = [1, 1]} : vector<128x8xf32> to vector<128x4xf32>
    %32 = vector.shape_cast %31 : vector<128x4xf32> to vector<8x16x4xf32>
    %33 = vector.extract_strided_slice %30 {offsets = [0, 4], sizes = [128, 4], strides = [1, 1]} : vector<128x8xf32> to vector<128x4xf32>
    %34 = vector.shape_cast %33 : vector<128x4xf32> to vector<8x16x4xf32>
    %c0_23 = arith.constant 0 : index
    %c0_24 = arith.constant 0 : index
    %c0_25 = arith.constant 0 : index
    %c0_26 = arith.constant 0 : index
    %c0_27 = arith.constant 0 : index
    %35 = vector.load %arg6[%c0_23, %c0_24, %c0_25, %c0_26, %c0_27] : memref<1x2x8x16x4xf32, #tpu.memory_space<vmem>>, vector<1x1x8x16x4xf32>
    %36 = vector.shape_cast %35 : vector<1x1x8x16x4xf32> to vector<8x16x4xf32>
    %37 = vector.shape_cast %32 : vector<8x16x4xf32> to vector<1x1x8x16x4xf32>
    tpu.vector_store %arg6[%c0_23, %c0_24, %c0_25, %c0_26, %c0_27], %37 {strides = array<i32>} : memref<1x2x8x16x4xf32, #tpu.memory_space<vmem>>, vector<1x1x8x16x4xf32>,
    %c0_28 = arith.constant 0 : index
    %c1 = arith.constant 1 : index
    %c0_29 = arith.constant 0 : index
    %c0_30 = arith.constant 0 : index
    %c0_31 = arith.constant 0 : index
    %38 = vector.load %arg6[%c0_28, %c1, %c0_29, %c0_30, %c0_31] : memref<1x2x8x16x4xf32, #tpu.memory_space<vmem>>, vector<1x1x8x16x4xf32>
    %39 = vector.shape_cast %38 : vector<1x1x8x16x4xf32> to vector<8x16x4xf32>
    %40 = vector.shape_cast %34 : vector<8x16x4xf32> to vector<1x1x8x16x4xf32>
    tpu.vector_store %arg6[%c0_28, %c1, %c0_29, %c0_30, %c0_31], %40 {strides = array<i32>} : memref<1x2x8x16x4xf32, #tpu.memory_space<vmem>>, vector<1x1x8x16x4xf32>,
    return
  }
  func.func @transform_0(%arg0: i32, %arg1: i32) -> (i32, i32, i32, i32) {
    %c0_i32 = arith.constant 0 : i32
    %c0_i32_0 = arith.constant 0 : i32
    %c0_i32_1 = arith.constant 0 : i32
    return %arg0, %arg1, %c0_i32, %c0_i32_0 : i32, i32, i32, i32
  }
  func.func @transform_1(%arg0: i32, %arg1: i32) -> (i32, i32, i32, i32) {
    %c8_i32 = arith.constant 8 : i32
    %0 = arith.muli %arg1, %c8_i32 : i32
    %c8_i32_0 = arith.constant 8 : i32
    %1 = arith.addi %0, %c8_i32_0 : i32
    %c0_i32 = arith.constant 0 : i32
    %c0_i32_1 = arith.constant 0 : i32
    %c0_i32_2 = arith.constant 0 : i32
    return %arg0, %1, %c0_i32, %c0_i32_1 : i32, i32, i32, i32
  }
  func.func @transform_2(%arg0: i32, %arg1: i32) -> (i32, i32, i32, i32) {
    %c8_i32 = arith.constant 8 : i32
    %0 = arith.muli %arg1, %c8_i32 : i32
    %c8_i32_0 = arith.constant 8 : i32
    %1 = arith.addi %0, %c8_i32_0 : i32
    %c1_i32 = arith.constant 1 : i32
    %2 = arith.addi %1, %c1_i32 : i32
    %c0_i32 = arith.constant 0 : i32
    %c0_i32_1 = arith.constant 0 : i32
    %c0_i32_2 = arith.constant 0 : i32
    return %arg0, %2, %c0_i32, %c0_i32_1 : i32, i32, i32, i32
  }
  func.func @transform_3(%arg0: i32, %arg1: i32) -> (i32, i32) {
    %c0_i32 = arith.constant 0 : i32
    %c0_i32_0 = arith.constant 0 : i32
    %c0_i32_1 = arith.constant 0 : i32
    return %c0_i32, %c0_i32_0 : i32, i32
  }
  func.func @transform_4(%arg0: i32, %arg1: i32) -> (i32, i32, i32, i32, i32) {
    %c0_i32 = arith.constant 0 : i32
    %c0_i32_0 = arith.constant 0 : i32
    %c0_i32_1 = arith.constant 0 : i32
    %c0_i32_2 = arith.constant 0 : i32
    return %arg0, %c0_i32, %arg1, %c0_i32_0, %c0_i32_1 : i32, i32, i32, i32, i32
  }
}

</mosaic_0001>

<llo_original>
// kernel: upsample_forward.1
$region0: #{upsample_forward.1}
  #allocation0 [shape = 'u32[]', space=smem, size = 0x4, offset = 0x4, fixed_abs, tag = 'smem constant byte address 0x4 - core index']
  #allocation1 [shape = 'u32[144,128]{1,0:T(1,128)}', space=vmem, size = 0x12000, scoped, tag = 'internal scratch']
  #allocation2 [shape = 'f32[10,18,4]{2,1,0:T(8,128)}', space=vmem, size = 0x1e000, scoped, tag = 'scratch operand']
  %s0 = inlined_call_operand.vmem [shape: f32[2,18,18,4], index: 0, kind: input, shape index: {}, may-alias: {0,1,2}]
  %s1 = inlined_call_operand.vmem [shape: f32[2,18,18,4], index: 1, kind: input, shape index: {}, may-alias: {0,1,2}]
  %s2 = inlined_call_operand.vmem [shape: f32[2,18,18,4], index: 2, kind: input, shape index: {}, may-alias: {0,1,2}]
  %s3 = inlined_call_operand.vmem [shape: f32[36,8], index: 3, kind: input, shape index: {}]
  %s4 = inlined_call_operand.vmem [shape: f32[2,2,16,16,4], index: 4, kind: output, shape index: {}]
  %s5 = sld [smem:[#allocation0]]
  $region83: #{upsample_forward.1} parent=0
    _
  %s7 = ssub.s32 1, %s5
  %s8 = scalar_select 0, %s7, %s5
  $region1: #{upsample_forward.1} parent=0
    #allocation3 [shape = 'u8[262144]{0}', space=vmem, size = 0x40000, scoped, tag = 'output window, operand 0']
    loop: start=0, step=1, limit=6
    $region2: #{upsample_forward.1} parent=1 // loop_pre_header
      _
    $region3: #{upsample_forward.1} parent=1 // loop_header
      %s10 = sphi 0, %s14
      %p11 = scmp.ge.s32.totalorder %s10, 6
      %s17 = sphi 0, %s29
      %s18 = sphi 0, %s25
      %s19 = sphi 0, %s17
      %s20 = sphi 0, %s18
      %s21 = sphi 0, %s19
      %s22 = sphi 0, %s20
      %s34 = sphi 0, %s36
      %s37 = sphi 0, %s34
      %s38 = sphi 0, %s37
      %s54 = sphi 0, %s38
      %s66 = sphi 0, %s68
      %s69 = sphi 0, %s66
      %s70 = sphi 0, %s69
      %s86 = sphi 0, %s70
      %s98 = sphi 0, %s100
      %s101 = sphi 0, %s98
      %s102 = sphi 0, %s101
      %s118 = sphi 0, %s102
      %s122 = sphi 0, %s122
      %s124 = sphi 0, %s122
      %s125 = sphi 0, %s124
      %s139 = sphi 0, %s125
      %s147 = sphi 0, %s149
      %s150 = sphi 0, %s147
      %s151 = sphi 0, %s150
      %s167 = sphi 0, %s151
    $region4: #{upsample_forward.1} parent=1 // loop_header_branch
      %13 = sbr.rel (%p11) target = $region8
    $region5: #{upsample_forward.1} parent=1 // loop_body
      %s15 = ssub.s32 %s10, 1
      %s16 = ssub.s32 %s10, 2
      %s23 = sadd.s32 1, %s18
      %p24 = scmp.ge.s32.totalorder %s23, 2
      %s25 = scalar_select %p24, 0, %s23
      %s26 = sadd.s32 1, %s17
      %s27 = scalar_select %p24, %s26, %s17
      %p28 = scmp.ge.s32.totalorder %s27, 2
      %s29 = scalar_select %p28, 0, %s27
      %s30 = ssub.s32 %s17, %s29
      %s31 = ssub.s32 %s18, %s25
      %s32 = sor.u32 %s30, %s31
      %p33 = scmp.eq.s32.totalorder %s32, 0
      %s35 = sadd.s32 %s34, 1
      %s36 = scalar_select %p33, %s34, %s35
      %p39 = pneg %p33
      %p40 = scmp.eq.s32.totalorder %s10, 3
      %p41 = por %p39, %p40
      %p42 = scmp.ne.s32.totalorder %s34, %s37
      %p43 = scmp.eq.s32.totalorder %s10, 0
      %p44 = por %p42, %p43
      %p45 = scmp.ne.s32.totalorder %s34, %s37
      %p46 = scmp.eq.s32.totalorder %s15, 3
      %p47 = por %p45, %p46
      %p48 = scmp.ne.s32.totalorder %s37, %s38
      %p49 = scmp.eq.s32.totalorder %s15, 0
      %p50 = por %p48, %p49
      %p51 = scmp.ne.s32.totalorder %s37, %s38
      %p52 = scmp.eq.s32.totalorder %s16, 3
      %p53 = por %p51, %p52
      %p55 = scmp.ne.s32.totalorder %s38, %s54
      %p56 = scmp.eq.s32.totalorder %s16, 0
      %p57 = por %p55, %p56
      %s58 = smul.u32 %s18, 8
      %s59 = sadd.s32 %s58, 8
      %s60 = smul.u32 %s25, 8
      %s61 = sadd.s32 %s60, 8
      %s62 = ssub.s32 %s17, %s29
      %s63 = ssub.s32 %s59, %s61
      %s64 = sor.u32 %s62, %s63
      %p65 = scmp.eq.s32.totalorder %s64, 0
      %s67 = sadd.s32 %s66, 1
      %s68 = scalar_select %p65, %s66, %s67
      %p71 = pneg %p65
      %p72 = scmp.eq.s32.totalorder %s10, 3
      %p73 = por %p71, %p72
      %p74 = scmp.ne.s32.totalorder %s66, %s69
      %p75 = scmp.eq.s32.totalorder %s10, 0
      %p76 = por %p74, %p75
      %p77 = scmp.ne.s32.totalorder %s66, %s69
      %p78 = scmp.eq.s32.totalorder %s15, 3
      %p79 = por %p77, %p78
      %p80 = scmp.ne.s32.totalorder %s69, %s70
      %p81 = scmp.eq.s32.totalorder %s15, 0
      %p82 = por %p80, %p81
      %p83 = scmp.ne.s32.totalorder %s69, %s70
      %p84 = scmp.eq.s32.totalorder %s16, 3
      %p85 = por %p83, %p84
      %p87 = scmp.ne.s32.totalorder %s70, %s86
      %p88 = scmp.eq.s32.totalorder %s16, 0
      %p89 = por %p87, %p88
      %s90 = smul.u32 %s18, 8
      %s91 = sadd.s32 %s90, 9
      %s92 = smul.u32 %s25, 8
      %s93 = sadd.s32 %s92, 9
      %s94 = ssub.s32 %s17, %s29
      %s95 = ssub.s32 %s91, %s93
      %s96 = sor.u32 %s94, %s95
      %p97 = scmp.eq.s32.totalorder %s96, 0
      %s99 = sadd.s32 %s98, 1
      %s100 = scalar_select %p97, %s98, %s99
      %p103 = pneg %p97
      %p104 = scmp.eq.s32.totalorder %s10, 3
      %p105 = por %p103, %p104
      %p106 = scmp.ne.s32.totalorder %s98, %s101
      %p107 = scmp.eq.s32.totalorder %s10, 0
      %p108 = por %p106, %p107
      %p109 = scmp.ne.s32.totalorder %s98, %s101
      %p110 = scmp.eq.s32.totalorder %s15, 3
      %p111 = por %p109, %p110
      %p112 = scmp.ne.s32.totalorder %s101, %s102
      %p113 = scmp.eq.s32.totalorder %s15, 0
      %p114 = por %p112, %p113
      %p115 = scmp.ne.s32.totalorder %s101, %s102
      %p116 = scmp.eq.s32.totalorder %s16, 3
      %p117 = por %p115, %p116
      %p119 = scmp.ne.s32.totalorder %s102, %s118
      %p120 = scmp.eq.s32.totalorder %s16, 0
      %p121 = por %p119, %p120
      %s123 = sadd.s32 %s122, 1
      %p126 = scmp.eq.s32.totalorder %s10, 3
      %p127 = scmp.ne.s32.totalorder %s122, %s124
      %p128 = scmp.eq.s32.totalorder %s10, 0
      %p129 = por %p127, %p128
      %p130 = scmp.ne.s32.totalorder %s122, %s124
      %p131 = scmp.eq.s32.totalorder %s15, 3
      %p132 = por %p130, %p131
      %p133 = scmp.ne.s32.totalorder %s124, %s125
      %p134 = scmp.eq.s32.totalorder %s15, 0
      %p135 = por %p133, %p134
      %p136 = scmp.ne.s32.totalorder %s124, %s125
      %p137 = scmp.eq.s32.totalorder %s16, 3
      %p138 = por %p136, %p137
      %p140 = scmp.ne.s32.totalorder %s125, %s139
      %p141 = scmp.eq.s32.totalorder %s16, 0
      %p142 = por %p140, %p141
      %s143 = ssub.s32 %s17, %s29
      %s144 = ssub.s32 %s18, %s25
      %s145 = sor.u32 %s143, %s144
      %p146 = scmp.eq.s32.totalorder %s145, 0
      %s148 = sadd.s32 %s147, 1
      %s149 = scalar_select %p146, %s147, %s148
      %p152 = pneg %p146
      %p153 = scmp.eq.s32.totalorder %s10, 3
      %p154 = por %p152, %p153
      %p155 = scmp.ne.s32.totalorder %s147, %s150
      %p156 = scmp.eq.s32.totalorder %s10, 0
      %p157 = por %p155, %p156
      %p158 = scmp.ne.s32.totalorder %s147, %s150
      %p159 = scmp.eq.s32.totalorder %s15, 3
      %p160 = por %p158, %p159
      %p161 = scmp.ne.s32.totalorder %s150, %s151
      %p162 = scmp.eq.s32.totalorder %s15, 0
      %p163 = por %p161, %p162
      %p164 = scmp.ne.s32.totalorder %s150, %s151
      %p165 = scmp.eq.s32.totalorder %s16, 3
      %p166 = por %p164, %p165
      %p168 = scmp.ne.s32.totalorder %s151, %s167
      %p169 = scmp.eq.s32.totalorder %s16, 0
      %p170 = por %p168, %p169
      %p171 = scmp.le.s32.totalorder 1, %s10
      %p172 = scmp.lt.s32.totalorder %s10, 5
      %p173 = pnand %p171, %p172
      %p174 = pneg %p173
      // Predicated region
      $region9: #{upsample_forward.1} parent=5 // pred_check
        _
      $region10: #{upsample_forward.1} parent=5 // pred_check_branch
        %176 = sbr.rel (%p173) target = $region12
      $region11: #{upsample_forward.1} parent=5 // pred_region
        %s177 = ssub.s32 %s10, 1
        // Predicated region
        $region13: #{upsample_forward.1} parent=11 // pred_check
          %p178 = pneg %p135
        $region14: #{upsample_forward.1} parent=11 // pred_check_branch
          %180 = sbr.rel (%p178) target = $region16
        $region15: #{upsample_forward.1} parent=11 // pred_region
          _
        $region16: #{upsample_forward.1} parent=11 // pred_fallthru
          _
      $region12: #{upsample_forward.1} parent=5 // pred_fallthru
        _
      %p181 = scmp.lt.s32.totalorder %s10, 4
      // Predicated region
      $region17: #{upsample_forward.1} parent=5 // pred_check
        %p182 = pneg %p181
      $region18: #{upsample_forward.1} parent=5 // pred_check_branch
        %184 = sbr.rel (%p182) target = $region20
      $region19: #{upsample_forward.1} parent=5 // pred_region
        // Predicated region
        $region21: #{upsample_forward.1} parent=19 // pred_check
          %p185 = pneg %p44
        $region22: #{upsample_forward.1} parent=19 // pred_check_branch
          %187 = sbr.rel (%p185) target = $region24
        $region23: #{upsample_forward.1} parent=19 // pred_region
          %s188 = smul.u32 8, %s18
          %s189 = ssub.s32 18, %s188
          %p190 = scmp.lt.s32.totalorder %s189, 8
          %s191 = scalar_select %p190, %s189, 8
          %s192 = smul.u32 128, %s191
          %s193 = smul.u32 %s192, 3
          %p194 = scmp.lt.s32.totalorder %s17, 1
          %s195 = scalar_select %p194, %s17, 1
          %p196 = scmp.lt.s32.totalorder %s188, 17
          %s197 = scalar_select %p196, %s188, 17
          %s198 = smul.addr %s197, 3
          %s199 = smul.addr %s195, 54
          %s200 = sadd.s32 %s198, %s199
          %s201 = smul.addr %s200, 8
          %s202 = scalar_lea.vmem %s0, %s201
          %s203 = smul.u32 8, %s18
          %s204 = ssub.s32 18, %s203
          %p205 = scmp.lt.s32.totalorder %s204, 8
          %s206 = scalar_select %p205, %s204, 8
          %s207 = smul.u32 128, %s206
          %s208 = smul.u32 %s207, 3
        $region24: #{upsample_forward.1} parent=19 // pred_fallthru
          _
        // Predicated region
        $region25: #{upsample_forward.1} parent=19 // pred_check
          %p209 = pneg %p76
        $region26: #{upsample_forward.1} parent=19 // pred_check_branch
          %211 = sbr.rel (%p209) target = $region28
        $region27: #{upsample_forward.1} parent=19 // pred_region
          %s212 = smul.u32 %s18, 8
          %s213 = sadd.s32 %s212, 8
          %p214 = scmp.lt.s32.totalorder %s17, 1
          %s215 = scalar_select %p214, %s17, 1
          %p216 = scmp.lt.s32.totalorder %s213, 17
          %s217 = scalar_select %p216, %s213, 17
          %s218 = smul.addr %s217, 3
          %s219 = smul.addr %s215, 54
          %s220 = sadd.s32 %s218, %s219
          %s221 = smul.addr %s220, 8
          %s222 = scalar_lea.vmem %s1, %s221
          %s223 = smul.u32 %s18, 8
          %s224 = sadd.s32 %s223, 8
        $region28: #{upsample_forward.1} parent=19 // pred_fallthru
          _
        // Predicated region
        $region29: #{upsample_forward.1} parent=19 // pred_check
          %p225 = pneg %p108
        $region30: #{upsample_forward.1} parent=19 // pred_check_branch
          %227 = sbr.rel (%p225) target = $region32
        $region31: #{upsample_forward.1} parent=19 // pred_region
          %s228 = smul.u32 %s18, 8
          %s229 = sadd.s32 %s228, 9
          %p230 = scmp.lt.s32.totalorder %s17, 1
          %s231 = scalar_select %p230, %s17, 1
          %p232 = scmp.lt.s32.totalorder %s229, 17
          %s233 = scalar_select %p232, %s229, 17
          %s234 = smul.addr %s233, 3
          %s235 = smul.addr %s231, 54
          %s236 = sadd.s32 %s234, %s235
          %s237 = smul.addr %s236, 8
          %s238 = scalar_lea.vmem %s2, %s237
          %s239 = smul.u32 %s18, 8
          %s240 = sadd.s32 %s239, 9
        $region32: #{upsample_forward.1} parent=19 // pred_fallthru
          _
      $region20: #{upsample_forward.1} parent=5 // pred_fallthru
        _
      %p241 = scmp.le.s32.totalorder 1, %s10
      %p242 = scmp.lt.s32.totalorder %s10, 5
      %p243 = pnand %p241, %p242
      %p244 = pneg %p243
      // Predicated region
      $region33: #{upsample_forward.1} parent=5 // pred_check
        _
      $region34: #{upsample_forward.1} parent=5 // pred_check_branch
        %246 = sbr.rel (%p243) target = $region36
      $region35: #{upsample_forward.1} parent=5 // pred_region
        %s247 = ssub.s32 %s10, 1
        %s248 = smul.u32 8, %s20
        %s249 = ssub.s32 18, %s248
        %p250 = scmp.lt.s32.totalorder %s249, 8
        %s251 = scalar_select %p250, %s249, 8
        %s252 = smul.u32 128, %s251
        %s253 = smul.u32 %s252, 3
        %p254 = scmp.lt.s32.totalorder %s19, 1
        %s255 = scalar_select %p254, %s19, 1
        %p256 = scmp.lt.s32.totalorder %s248, 17
        %s257 = scalar_select %p256, %s248, 17
        %s258 = smul.addr %s257, 3
        %s259 = smul.addr %s255, 54
        %s260 = sadd.s32 %s258, %s259
        %s261 = smul.addr %s260, 8
        %s262 = scalar_lea.vmem %s0, %s261
        %p263 = pneg %p50
        %p264 = pneg %p47
        %s265 = smul.u32 %s20, 8
        %s266 = sadd.s32 %s265, 8
        %p267 = scmp.lt.s32.totalorder %s19, 1
        %s268 = scalar_select %p267, %s19, 1
        %p269 = scmp.lt.s32.totalorder %s266, 17
        %s270 = scalar_select %p269, %s266, 17
        %s271 = smul.addr %s270, 3
        %s272 = smul.addr %s268, 54
        %s273 = sadd.s32 %s271, %s272
        %s274 = smul.addr %s273, 8
        %s275 = scalar_lea.vmem %s1, %s274
        %p276 = pneg %p82
        %p277 = pneg %p79
        %s278 = smul.u32 %s20, 8
        %s279 = sadd.s32 %s278, 9
        %p280 = scmp.lt.s32.totalorder %s19, 1
        %s281 = scalar_select %p280, %s19, 1
        %p282 = scmp.lt.s32.totalorder %s279, 17
        %s283 = scalar_select %p282, %s279, 17
        %s284 = smul.addr %s283, 3
        %s285 = smul.addr %s281, 54
        %s286 = sadd.s32 %s284, %s285
        %s287 = smul.addr %s286, 8
        %s288 = scalar_lea.vmem %s2, %s287
        %p289 = pneg %p114
        %p290 = pneg %p111
        %p291 = pneg %p135
        %p292 = pneg %p132
        %p293 = pneg %p163
        %p294 = pneg %p160
        %s295 = sand.u32 %s150, 1
        %s296 = sand.u32 %s150, 1
        %s297 = smul.addr %s296, 256
        %s298 = scalar_lea.vmem [#allocation3], %s297
        %s299 = smul.u32 8, %s20
        %s300 = ssub.s32 18, %s299
        %p301 = scmp.lt.s32.totalorder %s300, 8
        %s302 = scalar_select %p301, %s300, 8
        %s303 = smul.u32 128, %s302
        %s304 = smul.u32 %s303, 3
        %p305 = scmp.lt.s32.totalorder %s19, 1
        %s306 = scalar_select %p305, %s19, 1
        %p307 = scmp.lt.s32.totalorder %s299, 17
        %s308 = scalar_select %p307, %s299, 17
        %s309 = smul.addr %s308, 3
        %s310 = smul.addr %s306, 54
        %s311 = sadd.s32 %s309, %s310
        %s312 = smul.addr %s311, 8
        %s313 = scalar_lea.vmem %s0, %s312
        %s314 = smul.u32 8, %s20
        %s315 = ssub.s32 18, %s314
        %p316 = scmp.lt.s32.totalorder %s315, 8
        %s317 = scalar_select %p316, %s315, 8
        %s318 = smul.u32 128, %s317
        %s319 = smul.u32 %s318, 3
        %s320 = smul.u32 %s20, 8
        %s321 = sadd.s32 %s320, 8
        %p322 = scmp.lt.s32.totalorder %s19, 1
        %s323 = scalar_select %p322, %s19, 1
        %p324 = scmp.lt.s32.totalorder %s321, 17
        %s325 = scalar_select %p324, %s321, 17
        %s326 = smul.addr %s325, 3
        %s327 = smul.addr %s323, 54
        %s328 = sadd.s32 %s326, %s327
        %s329 = smul.addr %s328, 8
        %s330 = scalar_lea.vmem %s1, %s329
        %s331 = smul.u32 %s20, 8
        %s332 = sadd.s32 %s331, 8
        %s333 = smul.u32 %s20, 8
        %s334 = sadd.s32 %s333, 9
        %p335 = scmp.lt.s32.totalorder %s19, 1
        %s336 = scalar_select %p335, %s19, 1
        %p337 = scmp.lt.s32.totalorder %s334, 17
        %s338 = scalar_select %p337, %s334, 17
        %s339 = smul.addr %s338, 3
        %s340 = smul.addr %s336, 54
        %s341 = sadd.s32 %s339, %s340
        %s342 = smul.addr %s341, 8
        %s343 = scalar_lea.vmem %s2, %s342
        %s344 = smul.u32 %s20, 8
        %s345 = sadd.s32 %s344, 9
        %s346 = smul.u32 8, %s20
        %v347 = vld [vmem:[%s313] sm:$0xff]
        %v348 = vld [vmem:[%s313 + $0x8] sm:$0xff]
        %v349 = vld [vmem:[%s313 + $0x10] sm:$0x3]
        %v350 = vld [vmem:[%s313 + $0x18] sm:$0xff]
        %v351 = vld [vmem:[%s313 + $0x20] sm:$0xff]
        %v352 = vld [vmem:[%s313 + $0x28] sm:$0x3]
        %v353 = vld [vmem:[%s313 + $0x30] sm:$0xff]
        %v354 = vld [vmem:[%s313 + $0x38] sm:$0xff]
        %v355 = vld [vmem:[%s313 + $0x40] sm:$0x3]
        %v356 = vld [vmem:[%s313 + $0x48] sm:$0xff]
        %v357 = vld [vmem:[%s313 + $0x50] sm:$0xff]
        %v358 = vld [vmem:[%s313 + $0x58] sm:$0x3]
        %v359 = vld [vmem:[%s313 + $0x60] sm:$0xff]
        %v360 = vld [vmem:[%s313 + $0x68] sm:$0xff]
        %v361 = vld [vmem:[%s313 + $0x70] sm:$0x3]
        %v362 = vld [vmem:[%s313 + $0x78] sm:$0xff]
        %v363 = vld [vmem:[%s313 + $0x80] sm:$0xff]
        %v364 = vld [vmem:[%s313 + $0x88] sm:$0x3]
        %v365 = vld [vmem:[%s313 + $0x90] sm:$0xff]
        %v366 = vld [vmem:[%s313 + $0x98] sm:$0xff]
        %v367 = vld [vmem:[%s313 + $0xa0] sm:$0x3]
        %v368 = vld [vmem:[%s313 + $0xa8] sm:$0xff]
        %v369 = vld [vmem:[%s313 + $0xb0] sm:$0xff]
        %v370 = vld [vmem:[%s313 + $0xb8] sm:$0x3]
        %vm371 = vcmask 31744
        %372 = vst.msk [vmem:[#allocation2] sm:$0xff] %vm371, %v347
        %373 = vst.msk [vmem:[#allocation2 + $0x8] sm:$0xff] %vm371, %v348
        %vm374 = vcmask 25600
        %375 = vst.msk [vmem:[#allocation2 + $0x10] sm:$0x3] %vm374, %v349
        %376 = vst.msk [vmem:[#allocation2 + $0x18] sm:$0xff] %vm371, %v350
        %377 = vst.msk [vmem:[#allocation2 + $0x20] sm:$0xff] %vm371, %v351
        %378 = vst.msk [vmem:[#allocation2 + $0x28] sm:$0x3] %vm374, %v352
        %379 = vst.msk [vmem:[#allocation2 + $0x30] sm:$0xff] %vm371, %v353
        %380 = vst.msk [vmem:[#allocation2 + $0x38] sm:$0xff] %vm371, %v354
        %381 = vst.msk [vmem:[#allocation2 + $0x40] sm:$0x3] %vm374, %v355
        %382 = vst.msk [vmem:[#allocation2 + $0x48] sm:$0xff] %vm371, %v356
        %383 = vst.msk [vmem:[#allocation2 + $0x50] sm:$0xff] %vm371, %v357
        %384 = vst.msk [vmem:[#allocation2 + $0x58] sm:$0x3] %vm374, %v358
        %385 = vst.msk [vmem:[#allocation2 + $0x60] sm:$0xff] %vm371, %v359
        %386 = vst.msk [vmem:[#allocation2 + $0x68] sm:$0xff] %vm371, %v360
        %387 = vst.msk [vmem:[#allocation2 + $0x70] sm:$0x3] %vm374, %v361
        %388 = vst.msk [vmem:[#allocation2 + $0x78] sm:$0xff] %vm371, %v362
        %389 = vst.msk [vmem:[#allocation2 + $0x80] sm:$0xff] %vm371, %v363
        %390 = vst.msk [vmem:[#allocation2 + $0x88] sm:$0x3] %vm374, %v364
        %391 = vst.msk [vmem:[#allocation2 + $0x90] sm:$0xff] %vm371, %v365
        %392 = vst.msk [vmem:[#allocation2 + $0x98] sm:$0xff] %vm371, %v366
        %393 = vst.msk [vmem:[#allocation2 + $0xa0] sm:$0x3] %vm374, %v367
        %394 = vst.msk [vmem:[#allocation2 + $0xa8] sm:$0xff] %vm371, %v368
        %395 = vst.msk [vmem:[#allocation2 + $0xb0] sm:$0xff] %vm371, %v369
        %396 = vst.msk [vmem:[#allocation2 + $0xb8] sm:$0x3] %vm374, %v370
        %v397 = vld [vmem:[%s330] sm:$0xff]
        %v398 = vld [vmem:[%s330 + $0x8] sm:$0xff]
        %v399 = vld [vmem:[%s330 + $0x10] sm:$0x3]
        %s400 = scalar_lea.vmem [#allocation2], 192
        %401 = vst.msk [vmem:[%s400] sm:$0xff] %vm371, %v397
        %402 = vst.msk [vmem:[%s400 + $0x8] sm:$0xff] %vm371, %v398
        %403 = vst.msk [vmem:[%s400 + $0x10] sm:$0x3] %vm374, %v399
        %v404 = vld [vmem:[%s343] sm:$0xff]
        %v405 = vld [vmem:[%s343 + $0x8] sm:$0xff]
        %v406 = vld [vmem:[%s343 + $0x10] sm:$0x3]
        %s407 = scalar_lea.vmem [#allocation2], 216
        %408 = vst.msk [vmem:[%s407] sm:$0xff] %vm371, %v404
        %409 = vst.msk [vmem:[%s407 + $0x8] sm:$0xff] %vm371, %v405
        %410 = vst.msk [vmem:[%s407 + $0x10] sm:$0x3] %vm374, %v406
        %v411 = vld [vmem:[#allocation2] sm:$0xff]
        %v412 = vld [vmem:[#allocation2 + $0x8] sm:$0xff]
        %v413 = vld [vmem:[#allocation2 + $0x10] sm:$0x3]
        %v414 = vld [vmem:[#allocation2 + $0x18] sm:$0xff]
        %v415 = vld [vmem:[#allocation2 + $0x20] sm:$0xff]
        %v416 = vld [vmem:[#allocation2 + $0x28] sm:$0x3]
        %v417 = vld [vmem:[#allocation2 + $0x30] sm:$0xff]
        %v418 = vld [vmem:[#allocation2 + $0x38] sm:$0xff]
        %v419 = vld [vmem:[#allocation2 + $0x40] sm:$0x3]
        %v420 = vld [vmem:[#allocation2 + $0x48] sm:$0xff]
        %v421 = vld [vmem:[#allocation2 + $0x50] sm:$0xff]
        %v422 = vld [vmem:[#allocation2 + $0x58] sm:$0x3]
        %v423 = vld [vmem:[#allocation2 + $0x60] sm:$0xff]
        %v424 = vld [vmem:[#allocation2 + $0x68] sm:$0xff]
        %v425 = vld [vmem:[#allocation2 + $0x70] sm:$0x3]
        %v426 = vld [vmem:[#allocation2 + $0x78] sm:$0xff]
        %v427 = vld [vmem:[#allocation2 + $0x80] sm:$0xff]
        %v428 = vld [vmem:[#allocation2 + $0x88] sm:$0x3]
        %v429 = vld [vmem:[#allocation2 + $0x90] sm:$0xff]
        %v430 = vld [vmem:[#allocation2 + $0x98] sm:$0xff]
        %v431 = vld [vmem:[#allocation2 + $0xa0] sm:$0x3]
        %v432 = vld [vmem:[#allocation2 + $0xa8] sm:$0xff]
        %v433 = vld [vmem:[#allocation2 + $0xb0] sm:$0xff]
        %v434 = vld [vmem:[#allocation2 + $0xb8] sm:$0x3]
        %v435 = vld [vmem:[#allocation2 + $0xc0] sm:$0xff]
        %v436 = vld [vmem:[#allocation2 + $0xc8] sm:$0xff]
        %v437 = vld [vmem:[#allocation2 + $0xd0] sm:$0x3]
        %v438 = vld [vmem:[#allocation2 + $0xd8] sm:$0xff]
        %v439 = vld [vmem:[#allocation2 + $0xe0] sm:$0xff]
        %v440 = vld [vmem:[#allocation2 + $0xe8] sm:$0x3]
        %vm465 = vcmask 1046528
        %v466 = vrot.slane %v411, 1
        %v467 = vrot.slane %v412, 1
        %v468 = vsel %vm465, %v466, %v467
        %v469 = vrot.slane %v413, 1
        %v470 = vsel %vm465, %v467, %v469
        %v471 = vrot.slane %v414, 1
        %v472 = vrot.slane %v415, 1
        %v473 = vsel %vm465, %v471, %v472
        %v474 = vrot.slane %v416, 1
        %v475 = vsel %vm465, %v472, %v474
        %v476 = vrot.slane %v417, 1
        %v477 = vrot.slane %v418, 1
        %v478 = vsel %vm465, %v476, %v477
        %v479 = vrot.slane %v419, 1
        %v480 = vsel %vm465, %v477, %v479
        %v481 = vrot.slane %v420, 1
        %v482 = vrot.slane %v421, 1
        %v483 = vsel %vm465, %v481, %v482
        %v484 = vrot.slane %v422, 1
        %v485 = vsel %vm465, %v482, %v484
        %v486 = vrot.slane %v423, 1
        %v487 = vrot.slane %v424, 1
        %v488 = vsel %vm465, %v486, %v487
        %v489 = vrot.slane %v425, 1
        %v490 = vsel %vm465, %v487, %v489
        %v491 = vrot.slane %v426, 1
        %v492 = vrot.slane %v427, 1
        %v493 = vsel %vm465, %v491, %v492
        %v494 = vrot.slane %v428, 1
        %v495 = vsel %vm465, %v492, %v494
        %v496 = vrot.slane %v429, 1
        %v497 = vrot.slane %v430, 1
        %v498 = vsel %vm465, %v496, %v497
        %v499 = vrot.slane %v431, 1
        %v500 = vsel %vm465, %v497, %v499
        %v501 = vrot.slane %v432, 1
        %v502 = vrot.slane %v433, 1
        %v503 = vsel %vm465, %v501, %v502
        %v504 = vrot.slane %v434, 1
        %v505 = vsel %vm465, %v502, %v504
        %vm506 = vcmask 1045504
        %v507 = vrot.slane %v411, 2
        %v508 = vrot.slane %v412, 2
        %v509 = vsel %vm506, %v507, %v508
        %v510 = vrot.slane %v413, 2
        %v511 = vsel %vm506, %v508, %v510
        %v512 = vrot.slane %v414, 2
        %v513 = vrot.slane %v415, 2
        %v514 = vsel %vm506, %v512, %v513
        %v515 = vrot.slane %v416, 2
        %v516 = vsel %vm506, %v513, %v515
        %v517 = vrot.slane %v417, 2
        %v518 = vrot.slane %v418, 2
        %v519 = vsel %vm506, %v517, %v518
        %v520 = vrot.slane %v419, 2
        %v521 = vsel %vm506, %v518, %v520
        %v522 = vrot.slane %v420, 2
        %v523 = vrot.slane %v421, 2
        %v524 = vsel %vm506, %v522, %v523
        %v525 = vrot.slane %v422, 2
        %v526 = vsel %vm506, %v523, %v525
        %v527 = vrot.slane %v423, 2
        %v528 = vrot.slane %v424, 2
        %v529 = vsel %vm506, %v527, %v528
        %v530 = vrot.slane %v425, 2
        %v531 = vsel %vm506, %v528, %v530
        %v532 = vrot.slane %v426, 2
        %v533 = vrot.slane %v427, 2
        %v534 = vsel %vm506, %v532, %v533
        %v535 = vrot.slane %v428, 2
        %v536 = vsel %vm506, %v533, %v535
        %v537 = vrot.slane %v429, 2
        %v538 = vrot.slane %v430, 2
        %v539 = vsel %vm506, %v537, %v538
        %v540 = vrot.slane %v431, 2
        %v541 = vsel %vm506, %v538, %v540
        %v542 = vrot.slane %v432, 2
        %v543 = vrot.slane %v433, 2
        %v544 = vsel %vm506, %v542, %v543
        %v545 = vrot.slane %v434, 2
        %v546 = vsel %vm506, %v543, %v545
        %v550 = vrot.slane %v435, 1
        %v551 = vrot.slane %v436, 1
        %v552 = vsel %vm465, %v550, %v551
        %v553 = vrot.slane %v437, 1
        %v554 = vsel %vm465, %v551, %v553
        %v555 = vrot.slane %v435, 2
        %v556 = vrot.slane %v436, 2
        %v557 = vsel %vm506, %v555, %v556
        %v558 = vrot.slane %v437, 2
        %v559 = vsel %vm506, %v556, %v558
        %v563 = vrot.slane %v438, 1
        %v564 = vrot.slane %v439, 1
        %v565 = vsel %vm465, %v563, %v564
        %v566 = vrot.slane %v440, 1
        %v567 = vsel %vm465, %v564, %v566
        %v568 = vrot.slane %v438, 2
        %v569 = vrot.slane %v439, 2
        %v570 = vsel %vm506, %v568, %v569
        %v571 = vrot.slane %v440, 2
        %v572 = vsel %vm506, %v569, %v571
        %573 = vrot.lane.b32.xlu0 %v468, 4
        %v574 = vpop.permute.xlu0 %573
        %575 = vrot.lane.b32.xlu0 %v470, 4
        %v576 = vpop.permute.xlu0 %575
        %577 = vrot.lane.b32.xlu0 %v473, 4
        %v578 = vpop.permute.xlu0 %577
        %579 = vrot.lane.b32.xlu0 %v475, 4
        %v580 = vpop.permute.xlu0 %579
        %581 = vrot.lane.b32.xlu0 %v478, 4
        %v582 = vpop.permute.xlu0 %581
        %583 = vrot.lane.b32.xlu0 %v480, 4
        %v584 = vpop.permute.xlu0 %583
        %585 = vrot.lane.b32.xlu0 %v483, 4
        %v586 = vpop.permute.xlu0 %585
        %587 = vrot.lane.b32.xlu0 %v485, 4
        %v588 = vpop.permute.xlu0 %587
        %589 = vrot.lane.b32.xlu0 %v488, 4
        %v590 = vpop.permute.xlu0 %589
        %591 = vrot.lane.b32.xlu0 %v490, 4
        %v592 = vpop.permute.xlu0 %591
        %593 = vrot.lane.b32.xlu0 %v493, 4
        %v594 = vpop.permute.xlu0 %593
        %595 = vrot.lane.b32.xlu0 %v495, 4
        %v596 = vpop.permute.xlu0 %595
        %597 = vrot.lane.b32.xlu0 %v498, 4
        %v598 = vpop.permute.xlu0 %597
        %599 = vrot.lane.b32.xlu0 %v500, 4
        %v600 = vpop.permute.xlu0 %599
        %601 = vrot.lane.b32.xlu0 %v503, 4
        %v602 = vpop.permute.xlu0 %601
        %603 = vrot.lane.b32.xlu0 %v505, 4
        %v604 = vpop.permute.xlu0 %603
        %621 = vrot.lane.b32.xlu0 %v509, 8
        %v622 = vpop.permute.xlu0 %621
        %623 = vrot.lane.b32.xlu0 %v511, 8
        %v624 = vpop.permute.xlu0 %623
        %625 = vrot.lane.b32.xlu0 %v514, 8
        %v626 = vpop.permute.xlu0 %625
        %627 = vrot.lane.b32.xlu0 %v516, 8
        %v628 = vpop.permute.xlu0 %627
        %629 = vrot.lane.b32.xlu0 %v519, 8
        %v630 = vpop.permute.xlu0 %629
        %631 = vrot.lane.b32.xlu0 %v521, 8
        %v632 = vpop.permute.xlu0 %631
        %633 = vrot.lane.b32.xlu0 %v524, 8
        %v634 = vpop.permute.xlu0 %633
        %635 = vrot.lane.b32.xlu0 %v526, 8
        %v636 = vpop.permute.xlu0 %635
        %637 = vrot.lane.b32.xlu0 %v529, 8
        %v638 = vpop.permute.xlu0 %637
        %639 = vrot.lane.b32.xlu0 %v531, 8
        %v640 = vpop.permute.xlu0 %639
        %641 = vrot.lane.b32.xlu0 %v534, 8
        %v642 = vpop.permute.xlu0 %641
        %643 = vrot.lane.b32.xlu0 %v536, 8
        %v644 = vpop.permute.xlu0 %643
        %645 = vrot.lane.b32.xlu0 %v539, 8
        %v646 = vpop.permute.xlu0 %645
        %647 = vrot.lane.b32.xlu0 %v541, 8
        %v648 = vpop.permute.xlu0 %647
        %649 = vrot.lane.b32.xlu0 %v544, 8
        %v650 = vpop.permute.xlu0 %649
        %651 = vrot.lane.b32.xlu0 %v546, 8
        %v652 = vpop.permute.xlu0 %651
        %669 = vrot.lane.b32.xlu0 %v414, 12
        %v670 = vpop.permute.xlu0 %669
        %671 = vrot.lane.b32.xlu0 %v415, 12
        %v672 = vpop.permute.xlu0 %671
        %673 = vrot.lane.b32.xlu0 %v417, 12
        %v674 = vpop.permute.xlu0 %673
        %675 = vrot.lane.b32.xlu0 %v418, 12
        %v676 = vpop.permute.xlu0 %675
        %677 = vrot.lane.b32.xlu0 %v420, 12
        %v678 = vpop.permute.xlu0 %677
        %679 = vrot.lane.b32.xlu0 %v421, 12
        %v680 = vpop.permute.xlu0 %679
        %681 = vrot.lane.b32.xlu0 %v423, 12
        %v682 = vpop.permute.xlu0 %681
        %683 = vrot.lane.b32.xlu0 %v424, 12
        %v684 = vpop.permute.xlu0 %683
        %685 = vrot.lane.b32.xlu0 %v426, 12
        %v686 = vpop.permute.xlu0 %685
        %687 = vrot.lane.b32.xlu0 %v427, 12
        %v688 = vpop.permute.xlu0 %687
        %689 = vrot.lane.b32.xlu0 %v429, 12
        %v690 = vpop.permute.xlu0 %689
        %691 = vrot.lane.b32.xlu0 %v430, 12
        %v692 = vpop.permute.xlu0 %691
        %693 = vrot.lane.b32.xlu0 %v432, 12
        %v694 = vpop.permute.xlu0 %693
        %695 = vrot.lane.b32.xlu0 %v433, 12
        %v696 = vpop.permute.xlu0 %695
        %697 = vrot.lane.b32.xlu0 %v435, 12
        %v698 = vpop.permute.xlu0 %697
        %699 = vrot.lane.b32.xlu0 %v436, 12
        %v700 = vpop.permute.xlu0 %699
        %717 = vrot.lane.b32.xlu0 %v473, 16
        %v718 = vpop.permute.xlu0 %717
        %719 = vrot.lane.b32.xlu0 %v475, 16
        %v720 = vpop.permute.xlu0 %719
        %721 = vrot.lane.b32.xlu0 %v478, 16
        %v722 = vpop.permute.xlu0 %721
        %723 = vrot.lane.b32.xlu0 %v480, 16
        %v724 = vpop.permute.xlu0 %723
        %725 = vrot.lane.b32.xlu0 %v483, 16
        %v726 = vpop.permute.xlu0 %725
        %727 = vrot.lane.b32.xlu0 %v485, 16
        %v728 = vpop.permute.xlu0 %727
        %729 = vrot.lane.b32.xlu0 %v488, 16
        %v730 = vpop.permute.xlu0 %729
        %731 = vrot.lane.b32.xlu0 %v490, 16
        %v732 = vpop.permute.xlu0 %731
        %733 = vrot.lane.b32.xlu0 %v493, 16
        %v734 = vpop.permute.xlu0 %733
        %735 = vrot.lane.b32.xlu0 %v495, 16
        %v736 = vpop.permute.xlu0 %735
        %737 = vrot.lane.b32.xlu0 %v498, 16
        %v738 = vpop.permute.xlu0 %737
        %739 = vrot.lane.b32.xlu0 %v500, 16
        %v740 = vpop.permute.xlu0 %739
        %741 = vrot.lane.b32.xlu0 %v503, 16
        %v742 = vpop.permute.xlu0 %741
        %743 = vrot.lane.b32.xlu0 %v505, 16
        %v744 = vpop.permute.xlu0 %743
        %745 = vrot.lane.b32.xlu0 %v552, 16
        %v746 = vpop.permute.xlu0 %745
        %747 = vrot.lane.b32.xlu0 %v554, 16
        %v748 = vpop.permute.xlu0 %747
        %765 = vrot.lane.b32.xlu0 %v514, 20
        %v766 = vpop.permute.xlu0 %765
        %767 = vrot.lane.b32.xlu0 %v516, 20
        %v768 = vpop.permute.xlu0 %767
        %769 = vrot.lane.b32.xlu0 %v519, 20
        %v770 = vpop.permute.xlu0 %769
        %771 = vrot.lane.b32.xlu0 %v521, 20
        %v772 = vpop.permute.xlu0 %771
        %773 = vrot.lane.b32.xlu0 %v524, 20
        %v774 = vpop.permute.xlu0 %773
        %775 = vrot.lane.b32.xlu0 %v526, 20
        %v776 = vpop.permute.xlu0 %775
        %777 = vrot.lane.b32.xlu0 %v529, 20
        %v778 = vpop.permute.xlu0 %777
        %779 = vrot.lane.b32.xlu0 %v531, 20
        %v780 = vpop.permute.xlu0 %779
        %781 = vrot.lane.b32.xlu0 %v534, 20
        %v782 = vpop.permute.xlu0 %781
        %783 = vrot.lane.b32.xlu0 %v536, 20
        %v784 = vpop.permute.xlu0 %783
        %785 = vrot.lane.b32.xlu0 %v539, 20
        %v786 = vpop.permute.xlu0 %785
        %787 = vrot.lane.b32.xlu0 %v541, 20
        %v788 = vpop.permute.xlu0 %787
        %789 = vrot.lane.b32.xlu0 %v544, 20
        %v790 = vpop.permute.xlu0 %789
        %791 = vrot.lane.b32.xlu0 %v546, 20
        %v792 = vpop.permute.xlu0 %791
        %793 = vrot.lane.b32.xlu0 %v557, 20
        %v794 = vpop.permute.xlu0 %793
        %795 = vrot.lane.b32.xlu0 %v559, 20
        %v796 = vpop.permute.xlu0 %795
        %813 = vrot.lane.b32.xlu0 %v417, 24
        %v814 = vpop.permute.xlu0 %813
        %815 = vrot.lane.b32.xlu0 %v418, 24
        %v816 = vpop.permute.xlu0 %815
        %817 = vrot.lane.b32.xlu0 %v420, 24
        %v818 = vpop.permute.xlu0 %817
        %819 = vrot.lane.b32.xlu0 %v421, 24
        %v820 = vpop.permute.xlu0 %819
        %821 = vrot.lane.b32.xlu0 %v423, 24
        %v822 = vpop.permute.xlu0 %821
        %823 = vrot.lane.b32.xlu0 %v424, 24
        %v824 = vpop.permute.xlu0 %823
        %825 = vrot.lane.b32.xlu0 %v426, 24
        %v826 = vpop.permute.xlu0 %825
        %827 = vrot.lane.b32.xlu0 %v427, 24
        %v828 = vpop.permute.xlu0 %827
        %829 = vrot.lane.b32.xlu0 %v429, 24
        %v830 = vpop.permute.xlu0 %829
        %831 = vrot.lane.b32.xlu0 %v430, 24
        %v832 = vpop.permute.xlu0 %831
        %833 = vrot.lane.b32.xlu0 %v432, 24
        %v834 = vpop.permute.xlu0 %833
        %835 = vrot.lane.b32.xlu0 %v433, 24
        %v836 = vpop.permute.xlu0 %835
        %837 = vrot.lane.b32.xlu0 %v435, 24
        %v838 = vpop.permute.xlu0 %837
        %839 = vrot.lane.b32.xlu0 %v436, 24
        %v840 = vpop.permute.xlu0 %839
        %841 = vrot.lane.b32.xlu0 %v438, 24
        %v842 = vpop.permute.xlu0 %841
        %843 = vrot.lane.b32.xlu0 %v439, 24
        %v844 = vpop.permute.xlu0 %843
        %861 = vrot.lane.b32.xlu0 %v478, 28
        %v862 = vpop.permute.xlu0 %861
        %863 = vrot.lane.b32.xlu0 %v480, 28
        %v864 = vpop.permute.xlu0 %863
        %865 = vrot.lane.b32.xlu0 %v483, 28
        %v866 = vpop.permute.xlu0 %865
        %867 = vrot.lane.b32.xlu0 %v485, 28
        %v868 = vpop.permute.xlu0 %867
        %869 = vrot.lane.b32.xlu0 %v488, 28
        %v870 = vpop.permute.xlu0 %869
        %871 = vrot.lane.b32.xlu0 %v490, 28
        %v872 = vpop.permute.xlu0 %871
        %873 = vrot.lane.b32.xlu0 %v493, 28
        %v874 = vpop.permute.xlu0 %873
        %875 = vrot.lane.b32.xlu0 %v495, 28
        %v876 = vpop.permute.xlu0 %875
        %877 = vrot.lane.b32.xlu0 %v498, 28
        %v878 = vpop.permute.xlu0 %877
        %879 = vrot.lane.b32.xlu0 %v500, 28
        %v880 = vpop.permute.xlu0 %879
        %881 = vrot.lane.b32.xlu0 %v503, 28
        %v882 = vpop.permute.xlu0 %881
        %883 = vrot.lane.b32.xlu0 %v505, 28
        %v884 = vpop.permute.xlu0 %883
        %885 = vrot.lane.b32.xlu0 %v552, 28
        %v886 = vpop.permute.xlu0 %885
        %887 = vrot.lane.b32.xlu0 %v554, 28
        %v888 = vpop.permute.xlu0 %887
        %889 = vrot.lane.b32.xlu0 %v565, 28
        %v890 = vpop.permute.xlu0 %889
        %891 = vrot.lane.b32.xlu0 %v567, 28
        %v892 = vpop.permute.xlu0 %891
        %909 = vrot.lane.b32.xlu0 %v519, 32
        %v910 = vpop.permute.xlu0 %909
        %911 = vrot.lane.b32.xlu0 %v521, 32
        %v912 = vpop.permute.xlu0 %911
        %913 = vrot.lane.b32.xlu0 %v524, 32
        %v914 = vpop.permute.xlu0 %913
        %915 = vrot.lane.b32.xlu0 %v526, 32
        %v916 = vpop.permute.xlu0 %915
        %917 = vrot.lane.b32.xlu0 %v529, 32
        %v918 = vpop.permute.xlu0 %917
        %919 = vrot.lane.b32.xlu0 %v531, 32
        %v920 = vpop.permute.xlu0 %919
        %921 = vrot.lane.b32.xlu0 %v534, 32
        %v922 = vpop.permute.xlu0 %921
        %923 = vrot.lane.b32.xlu0 %v536, 32
        %v924 = vpop.permute.xlu0 %923
        %925 = vrot.lane.b32.xlu0 %v539, 32
        %v926 = vpop.permute.xlu0 %925
        %927 = vrot.lane.b32.xlu0 %v541, 32
        %v928 = vpop.permute.xlu0 %927
        %929 = vrot.lane.b32.xlu0 %v544, 32
        %v930 = vpop.permute.xlu0 %929
        %931 = vrot.lane.b32.xlu0 %v546, 32
        %v932 = vpop.permute.xlu0 %931
        %933 = vrot.lane.b32.xlu0 %v557, 32
        %v934 = vpop.permute.xlu0 %933
        %935 = vrot.lane.b32.xlu0 %v559, 32
        %v936 = vpop.permute.xlu0 %935
        %937 = vrot.lane.b32.xlu0 %v570, 32
        %v938 = vpop.permute.xlu0 %937
        %939 = vrot.lane.b32.xlu0 %v572, 32
        %v940 = vpop.permute.xlu0 %939
        %v957 = vsel %vm371, %v411, %v574
        %v958 = vsel %vm371, %v412, %v576
        %v959 = vsel %vm371, %v414, %v578
        %v960 = vsel %vm371, %v415, %v580
        %v961 = vsel %vm371, %v417, %v582
        %v962 = vsel %vm371, %v418, %v584
        %v963 = vsel %vm371, %v420, %v586
        %v964 = vsel %vm371, %v421, %v588
        %v965 = vsel %vm371, %v423, %v590
        %v966 = vsel %vm371, %v424, %v592
        %v967 = vsel %vm371, %v426, %v594
        %v968 = vsel %vm371, %v427, %v596
        %v969 = vsel %vm371, %v429, %v598
        %v970 = vsel %vm371, %v430, %v600
        %v971 = vsel %vm371, %v432, %v602
        %v972 = vsel %vm371, %v433, %v604
        %vm973 = vcmask 64512
        %v974 = vsel %vm973, %v957, %v622
        %v975 = vsel %vm973, %v958, %v624
        %v976 = vsel %vm973, %v959, %v626
        %v977 = vsel %vm973, %v960, %v628
        %v978 = vsel %vm973, %v961, %v630
        %v979 = vsel %vm973, %v962, %v632
        %v980 = vsel %vm973, %v963, %v634
        %v981 = vsel %vm973, %v964, %v636
        %v982 = vsel %vm973, %v965, %v638
        %v983 = vsel %vm973, %v966, %v640
        %v984 = vsel %vm973, %v967, %v642
        %v985 = vsel %vm973, %v968, %v644
        %v986 = vsel %vm973, %v969, %v646
        %v987 = vsel %vm973, %v970, %v648
        %v988 = vsel %vm973, %v971, %v650
        %v989 = vsel %vm973, %v972, %v652
        %vm990 = vcmask 97280
        %v991 = vsel %vm990, %v974, %v670
        %v992 = vsel %vm990, %v975, %v672
        %v993 = vsel %vm990, %v976, %v674
        %v994 = vsel %vm990, %v977, %v676
        %v995 = vsel %vm990, %v978, %v678
        %v996 = vsel %vm990, %v979, %v680
        %v997 = vsel %vm990, %v980, %v682
        %v998 = vsel %vm990, %v981, %v684
        %v999 = vsel %vm990, %v982, %v686
        %v1000 = vsel %vm990, %v983, %v688
        %v1001 = vsel %vm990, %v984, %v690
        %v1002 = vsel %vm990, %v985, %v692
        %v1003 = vsel %vm990, %v986, %v694
        %v1004 = vsel %vm990, %v987, %v696
        %v1005 = vsel %vm990, %v988, %v698
        %v1006 = vsel %vm990, %v989, %v700
        %vm1007 = vcmask 130048
        %v1008 = vsel %vm1007, %v991, %v718
        %v1009 = vsel %vm1007, %v992, %v720
        %v1010 = vsel %vm1007, %v993, %v722
        %v1011 = vsel %vm1007, %v994, %v724
        %v1012 = vsel %vm1007, %v995, %v726
        %v1013 = vsel %vm1007, %v996, %v728
        %v1014 = vsel %vm1007, %v997, %v730
        %v1015 = vsel %vm1007, %v998, %v732
        %v1016 = vsel %vm1007, %v999, %v734
        %v1017 = vsel %vm1007, %v1000, %v736
        %v1018 = vsel %vm1007, %v1001, %v738
        %v1019 = vsel %vm1007, %v1002, %v740
        %v1020 = vsel %vm1007, %v1003, %v742
        %v1021 = vsel %vm1007, %v1004, %v744
        %v1022 = vsel %vm1007, %v1005, %v746
        %v1023 = vsel %vm1007, %v1006, %v748
        %vm1024 = vcmask 162816
        %v1025 = vsel %vm1024, %v1008, %v766
        %v1026 = vsel %vm1024, %v1009, %v768
        %v1027 = vsel %vm1024, %v1010, %v770
        %v1028 = vsel %vm1024, %v1011, %v772
        %v1029 = vsel %vm1024, %v1012, %v774
        %v1030 = vsel %vm1024, %v1013, %v776
        %v1031 = vsel %vm1024, %v1014, %v778
        %v1032 = vsel %vm1024, %v1015, %v780
        %v1033 = vsel %vm1024, %v1016, %v782
        %v1034 = vsel %vm1024, %v1017, %v784
        %v1035 = vsel %vm1024, %v1018, %v786
        %v1036 = vsel %vm1024, %v1019, %v788
        %v1037 = vsel %vm1024, %v1020, %v790
        %v1038 = vsel %vm1024, %v1021, %v792
        %v1039 = vsel %vm1024, %v1022, %v794
        %v1040 = vsel %vm1024, %v1023, %v796
        %vm1041 = vcmask 195584
        %v1042 = vsel %vm1041, %v1025, %v814
        %v1043 = vsel %vm1041, %v1026, %v816
        %v1044 = vsel %vm1041, %v1027, %v818
        %v1045 = vsel %vm1041, %v1028, %v820
        %v1046 = vsel %vm1041, %v1029, %v822
        %v1047 = vsel %vm1041, %v1030, %v824
        %v1048 = vsel %vm1041, %v1031, %v826
        %v1049 = vsel %vm1041, %v1032, %v828
        %v1050 = vsel %vm1041, %v1033, %v830
        %v1051 = vsel %vm1041, %v1034, %v832
        %v1052 = vsel %vm1041, %v1035, %v834
        %v1053 = vsel %vm1041, %v1036, %v836
        %v1054 = vsel %vm1041, %v1037, %v838
        %v1055 = vsel %vm1041, %v1038, %v840
        %v1056 = vsel %vm1041, %v1039, %v842
        %v1057 = vsel %vm1041, %v1040, %v844
        %vm1058 = vcmask 228352
        %v1059 = vsel %vm1058, %v1042, %v862
        %v1060 = vsel %vm1058, %v1043, %v864
        %v1061 = vsel %vm1058, %v1044, %v866
        %v1062 = vsel %vm1058, %v1045, %v868
        %v1063 = vsel %vm1058, %v1046, %v870
        %v1064 = vsel %vm1058, %v1047, %v872
        %v1065 = vsel %vm1058, %v1048, %v874
        %v1066 = vsel %vm1058, %v1049, %v876
        %v1067 = vsel %vm1058, %v1050, %v878
        %v1068 = vsel %vm1058, %v1051, %v880
        %v1069 = vsel %vm1058, %v1052, %v882
        %v1070 = vsel %vm1058, %v1053, %v884
        %v1071 = vsel %vm1058, %v1054, %v886
        %v1072 = vsel %vm1058, %v1055, %v888
        %v1073 = vsel %vm1058, %v1056, %v890
        %v1074 = vsel %vm1058, %v1057, %v892
        %vm1075 = vcmask 261120
        %v1076 = vsel %vm1075, %v1059, %v910
        %v1077 = vsel %vm1075, %v1060, %v912
        %v1078 = vsel %vm1075, %v1061, %v914
        %v1079 = vsel %vm1075, %v1062, %v916
        %v1080 = vsel %vm1075, %v1063, %v918
        %v1081 = vsel %vm1075, %v1064, %v920
        %v1082 = vsel %vm1075, %v1065, %v922
        %v1083 = vsel %vm1075, %v1066, %v924
        %v1084 = vsel %vm1075, %v1067, %v926
        %v1085 = vsel %vm1075, %v1068, %v928
        %v1086 = vsel %vm1075, %v1069, %v930
        %v1087 = vsel %vm1075, %v1070, %v932
        %v1088 = vsel %vm1075, %v1071, %v934
        %v1089 = vsel %vm1075, %v1072, %v936
        %v1090 = vsel %vm1075, %v1073, %v938
        %v1091 = vsel %vm1075, %v1074, %v940
        %v1092 = vld [vmem:[%s3] sm:$0xff]
        %v1093 = vld [vmem:[%s3 + $0x8] sm:$0xff]
        %v1094 = vld [vmem:[%s3 + $0x10] sm:$0xff]
        %v1095 = vld [vmem:[%s3 + $0x18] sm:$0xff]
        %v1096 = vld [vmem:[%s3 + $0x20] sm:$0xf]
        %vm1097 = vcmask 293888
        %v1099 = vsel %vm1097, %v1076, 0
        %v1102 = vsel %vm1097, %v1077, 0
        %v1105 = vsel %vm1097, %v1078, 0
        %v1108 = vsel %vm1097, %v1079, 0
        %v1111 = vsel %vm1097, %v1080, 0
        %v1114 = vsel %vm1097, %v1081, 0
        %v1117 = vsel %vm1097, %v1082, 0
        %v1120 = vsel %vm1097, %v1083, 0
        %v1123 = vsel %vm1097, %v1084, 0
        %v1126 = vsel %vm1097, %v1085, 0
        %v1129 = vsel %vm1097, %v1086, 0
        %v1132 = vsel %vm1097, %v1087, 0
        %v1135 = vsel %vm1097, %v1088, 0
        %v1138 = vsel %vm1097, %v1089, 0
        %v1141 = vsel %vm1097, %v1090, 0
        %v1144 = vsel %vm1097, %v1091, 0
        %vm1146 = vcmask 1043456
        %v1148 = vsel %vm1146, %v1096, 0
        %1150 = vmatprep.subr.mxu0 0.0
        %1151 = vmatpush1.msra.mxu0 0.0
        %1152 = vmatprep.subr.mxu0 0.0
        %1153 = vmatpush1.msra.mxu0 0.0
        %1154 = vmatprep.subr.mxu0 0.0
        %1155 = vmatpush1.msra.mxu0 0.0
        %1156 = vmatprep.subr.mxu0 0.0
        %1157 = vmatpush1.msra.mxu0 0.0
        %1158 = vmatprep.subr.mxu0 0.0
        %1159 = vmatpush1.msra.mxu0 0.0
        %1160 = vmatprep.subr.mxu0 0.0
        %1161 = vmatpush1.msra.mxu0 0.0
        %1162 = vmatprep.subr.mxu0 0.0
        %1163 = vmatpush1.msra.mxu0 0.0
        %1164 = vmatprep.subr.mxu0 0.0
        %1165 = vmatpush1.msra.mxu0 0.0
        %1166 = vmatprep.subr.mxu0 0.0
        %1167 = vmatpush1.msra.mxu0 0.0
        %1168 = vmatprep.subr.mxu0 0.0
        %1169 = vmatpush1.msra.mxu0 0.0
        %1170 = vmatprep.subr.mxu0 0.0
        %1171 = vmatpush1.msra.mxu0 0.0
        %1172 = vmatprep.subr.mxu0 0.0
        %1173 = vmatpush1.msra.mxu0 %v1148
        %1174 = vmatprep.subr.mxu0 0.0
        %1175 = vmatpush1.msra.mxu0 %v1095
        %1176 = vmatprep.subr.mxu0 0.0
        %1177 = vmatpush1.msra.mxu0 %v1094
        %1178 = vmatprep.subr.mxu0 0.0
        %1179 = vmatpush1.msra.mxu0 %v1093
        %1180 = vmatprep.subr.mxu0 0.0
        %1181 = vmatpush1.msra.mxu0 %v1092
        %1182 = vmatprep.subr.mxu0 0.0
        %1183 = vmatpush2.msra.mxu0 0.0
        %1184 = vmatprep.subr.mxu0 0.0
        %1185 = vmatpush2.msra.mxu0 0.0
        %1186 = vmatprep.subr.mxu0 0.0
        %1187 = vmatpush2.msra.mxu0 0.0
        %1188 = vmatprep.subr.mxu0 0.0
        %1189 = vmatpush2.msra.mxu0 0.0
        %1190 = vmatprep.subr.mxu0 0.0
        %1191 = vmatpush2.msra.mxu0 0.0
        %1192 = vmatprep.subr.mxu0 0.0
        %1193 = vmatpush2.msra.mxu0 0.0
        %1194 = vmatprep.subr.mxu0 0.0
        %1195 = vmatpush2.msra.mxu0 0.0
        %1196 = vmatprep.subr.mxu0 0.0
        %1197 = vmatpush2.msra.mxu0 0.0
        %1198 = vmatprep.subr.mxu0 0.0
        %1199 = vmatpush2.msra.mxu0 0.0
        %1200 = vmatprep.subr.mxu0 0.0
        %1201 = vmatpush2.msra.mxu0 0.0
        %1202 = vmatprep.subr.mxu0 0.0
        %1203 = vmatpush2.msra.mxu0 0.0
        %1204 = vmatprep.subr.mxu0 0.0
        %1205 = vmatpush2.msra.mxu0 0.0
        %1206 = vmatprep.subr.mxu0 0.0
        %1207 = vmatpush2.msra.mxu0 0.0
        %1208 = vmatprep.subr.mxu0 0.0
        %1209 = vmatpush2.msra.mxu0 0.0
        %1210 = vmatprep.subr.mxu0 0.0
        %1211 = vmatpush2.msra.mxu0 0.0
        %1212 = vmatprep.subr.mxu0 0.0
        %1213 = vmatpush2.msra.mxu0 0.0
        %1214 = vmatprep.mubr.f32.mxu0 0.0
        %1215 = vmatmul.mubr.f32.gmra.mxu0 %v1099
        %v1216 = vpop.f32.mrf.mxu0
        %v1217 = vadd.f32 0.0, %v1216
        %v1218 = vpop.f32.mrf.mxu0
        %1219 = vmatprep.mubr.f32.mxu0 0.0
        %1220 = vmatmul.mubr.f32.gmra.mxu0 %v1102
        %v1221 = vpop.f32.mrf.mxu0
        %v1222 = vadd.f32 0.0, %v1221
        %v1223 = vpop.f32.mrf.mxu0
        %1224 = vmatprep.mubr.f32.mxu0 0.0
        %1225 = vmatmul.mubr.f32.gmra.mxu0 %v1105
        %v1226 = vpop.f32.mrf.mxu0
        %v1227 = vadd.f32 0.0, %v1226
        %v1228 = vpop.f32.mrf.mxu0
        %1229 = vmatprep.mubr.f32.mxu0 0.0
        %1230 = vmatmul.mubr.f32.gmra.mxu0 %v1108
        %v1231 = vpop.f32.mrf.mxu0
        %v1232 = vadd.f32 0.0, %v1231
        %v1233 = vpop.f32.mrf.mxu0
        %1234 = vmatprep.mubr.f32.mxu0 0.0
        %1235 = vmatmul.mubr.f32.gmra.mxu0 %v1111
        %v1236 = vpop.f32.mrf.mxu0
        %v1237 = vadd.f32 0.0, %v1236
        %v1238 = vpop.f32.mrf.mxu0
        %1239 = vmatprep.mubr.f32.mxu0 0.0
        %1240 = vmatmul.mubr.f32.gmra.mxu0 %v1114
        %v1241 = vpop.f32.mrf.mxu0
        %v1242 = vadd.f32 0.0, %v1241
        %v1243 = vpop.f32.mrf.mxu0
        %1244 = vmatprep.mubr.f32.mxu0 0.0
        %1245 = vmatmul.mubr.f32.gmra.mxu0 %v1117
        %v1246 = vpop.f32.mrf.mxu0
        %v1247 = vadd.f32 0.0, %v1246
        %v1248 = vpop.f32.mrf.mxu0
        %1249 = vmatprep.mubr.f32.mxu0 0.0
        %1250 = vmatmul.mubr.f32.gmra.mxu0 %v1120
        %v1251 = vpop.f32.mrf.mxu0
        %v1252 = vadd.f32 0.0, %v1251
        %v1253 = vpop.f32.mrf.mxu0
        %1254 = vmatprep.mubr.f32.mxu0 0.0
        %1255 = vmatmul.mubr.f32.gmra.mxu0 %v1123
        %v1256 = vpop.f32.mrf.mxu0
        %v1257 = vadd.f32 0.0, %v1256
        %v1258 = vpop.f32.mrf.mxu0
        %1259 = vmatprep.mubr.f32.mxu0 0.0
        %1260 = vmatmul.mubr.f32.gmra.mxu0 %v1126
        %v1261 = vpop.f32.mrf.mxu0
        %v1262 = vadd.f32 0.0, %v1261
        %v1263 = vpop.f32.mrf.mxu0
        %1264 = vmatprep.mubr.f32.mxu0 0.0
        %1265 = vmatmul.mubr.f32.gmra.mxu0 %v1129
        %v1266 = vpop.f32.mrf.mxu0
        %v1267 = vadd.f32 0.0, %v1266
        %v1268 = vpop.f32.mrf.mxu0
        %1269 = vmatprep.mubr.f32.mxu0 0.0
        %1270 = vmatmul.mubr.f32.gmra.mxu0 %v1132
        %v1271 = vpop.f32.mrf.mxu0
        %v1272 = vadd.f32 0.0, %v1271
        %v1273 = vpop.f32.mrf.mxu0
        %1274 = vmatprep.mubr.f32.mxu0 0.0
        %1275 = vmatmul.mubr.f32.gmra.mxu0 %v1135
        %v1276 = vpop.f32.mrf.mxu0
        %v1277 = vadd.f32 0.0, %v1276
        %v1278 = vpop.f32.mrf.mxu0
        %1279 = vmatprep.mubr.f32.mxu0 0.0
        %1280 = vmatmul.mubr.f32.gmra.mxu0 %v1138
        %v1281 = vpop.f32.mrf.mxu0
        %v1282 = vadd.f32 0.0, %v1281
        %v1283 = vpop.f32.mrf.mxu0
        %1284 = vmatprep.mubr.f32.mxu0 0.0
        %1285 = vmatmul.mubr.f32.gmra.mxu0 %v1141
        %v1286 = vpop.f32.mrf.mxu0
        %v1287 = vadd.f32 0.0, %v1286
        %v1288 = vpop.f32.mrf.mxu0
        %1289 = vmatprep.mubr.f32.mxu0 0.0
        %1290 = vmatmul.mubr.f32.gmra.mxu0 %v1144
        %v1291 = vpop.f32.mrf.mxu0
        %v1292 = vadd.f32 0.0, %v1291
        %v1293 = vpop.f32.mrf.mxu0
        %1294 = vdwg.mxu0
        %1295 = vst.msk [vmem:[%s298] sm:$0xff] %vm371, %v1217
        %1296 = vst.msk [vmem:[%s298 + $0x8] sm:$0xff] %vm371, %v1222
        %1297 = vst.msk [vmem:[%s298 + $0x10] sm:$0xff] %vm371, %v1227
        %1298 = vst.msk [vmem:[%s298 + $0x18] sm:$0xff] %vm371, %v1232
        %1299 = vst.msk [vmem:[%s298 + $0x20] sm:$0xff] %vm371, %v1237
        %1300 = vst.msk [vmem:[%s298 + $0x28] sm:$0xff] %vm371, %v1242
        %1301 = vst.msk [vmem:[%s298 + $0x30] sm:$0xff] %vm371, %v1247
        %1302 = vst.msk [vmem:[%s298 + $0x38] sm:$0xff] %vm371, %v1252
        %1303 = vst.msk [vmem:[%s298 + $0x40] sm:$0xff] %vm371, %v1257
        %1304 = vst.msk [vmem:[%s298 + $0x48] sm:$0xff] %vm371, %v1262
        %1305 = vst.msk [vmem:[%s298 + $0x50] sm:$0xff] %vm371, %v1267
        %1306 = vst.msk [vmem:[%s298 + $0x58] sm:$0xff] %vm371, %v1272
        %1307 = vst.msk [vmem:[%s298 + $0x60] sm:$0xff] %vm371, %v1277
        %1308 = vst.msk [vmem:[%s298 + $0x68] sm:$0xff] %vm371, %v1282
        %1309 = vst.msk [vmem:[%s298 + $0x70] sm:$0xff] %vm371, %v1287
        %1310 = vst.msk [vmem:[%s298 + $0x78] sm:$0xff] %vm371, %v1292
        %1327 = vrot.lane.b32.xlu0 %v1217, 124
        %v1328 = vpop.permute.xlu0 %1327
        %1329 = vrot.lane.b32.xlu0 %v1222, 124
        %v1330 = vpop.permute.xlu0 %1329
        %1331 = vrot.lane.b32.xlu0 %v1227, 124
        %v1332 = vpop.permute.xlu0 %1331
        %1333 = vrot.lane.b32.xlu0 %v1232, 124
        %v1334 = vpop.permute.xlu0 %1333
        %1335 = vrot.lane.b32.xlu0 %v1237, 124
        %v1336 = vpop.permute.xlu0 %1335
        %1337 = vrot.lane.b32.xlu0 %v1242, 124
        %v1338 = vpop.permute.xlu0 %1337
        %1339 = vrot.lane.b32.xlu0 %v1247, 124
        %v1340 = vpop.permute.xlu0 %1339
        %1341 = vrot.lane.b32.xlu0 %v1252, 124
        %v1342 = vpop.permute.xlu0 %1341
        %1343 = vrot.lane.b32.xlu0 %v1257, 124
        %v1344 = vpop.permute.xlu0 %1343
        %1345 = vrot.lane.b32.xlu0 %v1262, 124
        %v1346 = vpop.permute.xlu0 %1345
        %1347 = vrot.lane.b32.xlu0 %v1267, 124
        %v1348 = vpop.permute.xlu0 %1347
        %1349 = vrot.lane.b32.xlu0 %v1272, 124
        %v1350 = vpop.permute.xlu0 %1349
        %1351 = vrot.lane.b32.xlu0 %v1277, 124
        %v1352 = vpop.permute.xlu0 %1351
        %1353 = vrot.lane.b32.xlu0 %v1282, 124
        %v1354 = vpop.permute.xlu0 %1353
        %1355 = vrot.lane.b32.xlu0 %v1287, 124
        %v1356 = vpop.permute.xlu0 %1355
        %1357 = vrot.lane.b32.xlu0 %v1292, 124
        %v1358 = vpop.permute.xlu0 %1357
        %s1375 = scalar_lea.vmem %s298, 128 [#allocation3]
        %1376 = vst.msk [vmem:[%s1375] sm:$0xff] %vm371, %v1328
        %1377 = vst.msk [vmem:[%s1375 + $0x8] sm:$0xff] %vm371, %v1330
        %1378 = vst.msk [vmem:[%s1375 + $0x10] sm:$0xff] %vm371, %v1332
        %1379 = vst.msk [vmem:[%s1375 + $0x18] sm:$0xff] %vm371, %v1334
        %1380 = vst.msk [vmem:[%s1375 + $0x20] sm:$0xff] %vm371, %v1336
        %1381 = vst.msk [vmem:[%s1375 + $0x28] sm:$0xff] %vm371, %v1338
        %1382 = vst.msk [vmem:[%s1375 + $0x30] sm:$0xff] %vm371, %v1340
        %1383 = vst.msk [vmem:[%s1375 + $0x38] sm:$0xff] %vm371, %v1342
        %1384 = vst.msk [vmem:[%s1375 + $0x40] sm:$0xff] %vm371, %v1344
        %1385 = vst.msk [vmem:[%s1375 + $0x48] sm:$0xff] %vm371, %v1346
        %1386 = vst.msk [vmem:[%s1375 + $0x50] sm:$0xff] %vm371, %v1348
        %1387 = vst.msk [vmem:[%s1375 + $0x58] sm:$0xff] %vm371, %v1350
        %1388 = vst.msk [vmem:[%s1375 + $0x60] sm:$0xff] %vm371, %v1352
        %1389 = vst.msk [vmem:[%s1375 + $0x68] sm:$0xff] %vm371, %v1354
        %1390 = vst.msk [vmem:[%s1375 + $0x70] sm:$0xff] %vm371, %v1356
        %1391 = vst.msk [vmem:[%s1375 + $0x78] sm:$0xff] %vm371, %v1358
        %s1392 = sand.u32 %s150, 1
        %s1393 = sand.u32 %s150, 1
        %s1394 = smul.addr %s1393, 256
        %s1395 = scalar_lea.vmem [#allocation3], %s1394
        // Predicated region
        $region37: #{upsample_forward.1} parent=35 // pred_check
          %p1396 = pneg %p160
        $region38: #{upsample_forward.1} parent=35 // pred_check_branch
          %1398 = sbr.rel (%p1396) target = $region40
        $region39: #{upsample_forward.1} parent=35 // pred_region
          %s1399 = smul.u32 8, %s20
          %s1400 = smul.addr %s1399, 2
          %s1401 = smul.addr %s19, 64
          %s1402 = sadd.s32 %s1400, %s1401
          %s1403 = smul.addr %s1402, 8
          %s1404 = scalar_lea.vmem %s4, %s1403
          // Predicated region
          $region41: #{upsample_forward.1} parent=39 // pred_check
            _
          $region42: #{upsample_forward.1} parent=39 // pred_check_branch
            %1406 = sbr.rel (0) target = $region44
          $region43: #{upsample_forward.1} parent=39 // pred_region
            // Predicated region
            $region45: #{upsample_forward.1} parent=43 // pred_check
              _
            $region46: #{upsample_forward.1} parent=43 // pred_check_branch
              %1408 = sbr.rel (0) target = $region48
            $region47: #{upsample_forward.1} parent=43 // pred_region
              // Predicated region
              $region60: #{upsample_forward.1} parent=47 // pred_check
                _
              $region61: #{upsample_forward.1} parent=47 // pred_check_branch
                %1486 = sbr.rel (0) target = $region63
              $region62: #{upsample_forward.1} parent=47 // pred_region
                loop: start=0, step=1, limit=1
                $region64: #{upsample_forward.1} parent=62 // loop_pre_header
                  _
                $region65: #{upsample_forward.1} parent=62 // loop_header
                  %s1488 = sphi 0, %s1492
                  %p1489 = scmp.ge.s32.totalorder %s1488, 1
                  %s1493 = sphi %s1395, %s1395
                  %s1494 = sphi %s1404, %s1404
                $region66: #{upsample_forward.1} parent=62 // loop_header_branch
                  %1491 = sbr.rel (%p1489) target = $region70
                $region67: #{upsample_forward.1} parent=62 // loop_body
                  %v1495 = vld [vmem:[%s1493] sm:$0xff]
                  %1496 = vst [vmem:[%s1494] sm:$0xff] %v1495
                  %v1497 = vld [vmem:[%s1493 + $0x8] sm:$0xff]
                  %1498 = vst [vmem:[%s1494 + $0x8] sm:$0xff] %v1497
                  %v1499 = vld [vmem:[%s1493 + $0x10] sm:$0xff]
                  %1500 = vst [vmem:[%s1494 + $0x10] sm:$0xff] %v1499
                  %v1501 = vld [vmem:[%s1493 + $0x18] sm:$0xff]
                  %1502 = vst [vmem:[%s1494 + $0x18] sm:$0xff] %v1501
                  %v1503 = vld [vmem:[%s1493 + $0x20] sm:$0xff]
                  %1504 = vst [vmem:[%s1494 + $0x20] sm:$0xff] %v1503
                  %v1505 = vld [vmem:[%s1493 + $0x28] sm:$0xff]
                  %1506 = vst [vmem:[%s1494 + $0x28] sm:$0xff] %v1505
                  %v1507 = vld [vmem:[%s1493 + $0x30] sm:$0xff]
                  %1508 = vst [vmem:[%s1494 + $0x30] sm:$0xff] %v1507
                  %v1509 = vld [vmem:[%s1493 + $0x38] sm:$0xff]
                  %1510 = vst [vmem:[%s1494 + $0x38] sm:$0xff] %v1509
                  %v1511 = vld [vmem:[%s1493 + $0x40] sm:$0xff]
                  %1512 = vst [vmem:[%s1494 + $0x40] sm:$0xff] %v1511
                  %v1513 = vld [vmem:[%s1493 + $0x48] sm:$0xff]
                  %1514 = vst [vmem:[%s1494 + $0x48] sm:$0xff] %v1513
                  %v1515 = vld [vmem:[%s1493 + $0x50] sm:$0xff]
                  %1516 = vst [vmem:[%s1494 + $0x50] sm:$0xff] %v1515
                  %v1517 = vld [vmem:[%s1493 + $0x58] sm:$0xff]
                  %1518 = vst [vmem:[%s1494 + $0x58] sm:$0xff] %v1517
                  %v1519 = vld [vmem:[%s1493 + $0x60] sm:$0xff]
                  %1520 = vst [vmem:[%s1494 + $0x60] sm:$0xff] %v1519
                  %v1521 = vld [vmem:[%s1493 + $0x68] sm:$0xff]
                  %1522 = vst [vmem:[%s1494 + $0x68] sm:$0xff] %v1521
                  %v1523 = vld [vmem:[%s1493 + $0x70] sm:$0xff]
                  %1524 = vst [vmem:[%s1494 + $0x70] sm:$0xff] %v1523
                  %v1525 = vld [vmem:[%s1493 + $0x78] sm:$0xff]
                  %1526 = vst [vmem:[%s1494 + $0x78] sm:$0xff] %v1525
                  %v1527 = vld [vmem:[%s1493 + $0x80] sm:$0xff]
                  %1528 = vst [vmem:[%s1494 + $0x100] sm:$0xff] %v1527
                  %v1529 = vld [vmem:[%s1493 + $0x88] sm:$0xff]
                  %1530 = vst [vmem:[%s1494 + $0x108] sm:$0xff] %v1529
                  %v1531 = vld [vmem:[%s1493 + $0x90] sm:$0xff]
                  %1532 = vst [vmem:[%s1494 + $0x110] sm:$0xff] %v1531
                  %v1533 = vld [vmem:[%s1493 + $0x98] sm:$0xff]
                  %1534 = vst [vmem:[%s1494 + $0x118] sm:$0xff] %v1533
                  %v1535 = vld [vmem:[%s1493 + $0xa0] sm:$0xff]
                  %1536 = vst [vmem:[%s1494 + $0x120] sm:$0xff] %v1535
                  %v1537 = vld [vmem:[%s1493 + $0xa8] sm:$0xff]
                  %1538 = vst [vmem:[%s1494 + $0x128] sm:$0xff] %v1537
                  %v1539 = vld [vmem:[%s1493 + $0xb0] sm:$0xff]
                  %1540 = vst [vmem:[%s1494 + $0x130] sm:$0xff] %v1539
                  %v1541 = vld [vmem:[%s1493 + $0xb8] sm:$0xff]
                  %1542 = vst [vmem:[%s1494 + $0x138] sm:$0xff] %v1541
                  %v1543 = vld [vmem:[%s1493 + $0xc0] sm:$0xff]
                  %1544 = vst [vmem:[%s1494 + $0x140] sm:$0xff] %v1543
                  %v1545 = vld [vmem:[%s1493 + $0xc8] sm:$0xff]
                  %1546 = vst [vmem:[%s1494 + $0x148] sm:$0xff] %v1545
                  %v1547 = vld [vmem:[%s1493 + $0xd0] sm:$0xff]
                  %1548 = vst [vmem:[%s1494 + $0x150] sm:$0xff] %v1547
                  %v1549 = vld [vmem:[%s1493 + $0xd8] sm:$0xff]
                  %1550 = vst [vmem:[%s1494 + $0x158] sm:$0xff] %v1549
                  %v1551 = vld [vmem:[%s1493 + $0xe0] sm:$0xff]
                  %1552 = vst [vmem:[%s1494 + $0x160] sm:$0xff] %v1551
                  %v1553 = vld [vmem:[%s1493 + $0xe8] sm:$0xff]
                  %1554 = vst [vmem:[%s1494 + $0x168] sm:$0xff] %v1553
                  %v1555 = vld [vmem:[%s1493 + $0xf0] sm:$0xff]
                  %1556 = vst [vmem:[%s1494 + $0x170] sm:$0xff] %v1555
                  %v1557 = vld [vmem:[%s1493 + $0xf8] sm:$0xff]
                  %1558 = vst [vmem:[%s1494 + $0x178] sm:$0xff] %v1557
                $region68: #{upsample_forward.1} parent=62 // loop_footer
                  %s1492 = sadd.s32 1, %s1488
                $region69: #{upsample_forward.1} parent=62 // loop_footer_branch
                  %1487 = sbr.rel target = $region65
                $region70: #{upsample_forward.1} parent=62 // loop_exit
                  _
              $region63: #{upsample_forward.1} parent=47 // pred_fallthru
                _
              // Predicated region
              $region71: #{upsample_forward.1} parent=47 // pred_check
                _
              $region72: #{upsample_forward.1} parent=47 // pred_check_branch
                %1560 = sbr.rel target = $region74
              $region73: #{upsample_forward.1} parent=47 // pred_region
                _
              $region74: #{upsample_forward.1} parent=47 // pred_fallthru
                _
            $region48: #{upsample_forward.1} parent=43 // pred_fallthru
              _
            // Predicated region
            $region49: #{upsample_forward.1} parent=43 // pred_check
              _
            $region50: #{upsample_forward.1} parent=43 // pred_check_branch
              %1410 = sbr.rel target = $region52
            $region51: #{upsample_forward.1} parent=43 // pred_region
              %s1412 = ssub.s32 256, 1
              loop: start=0, step=1, limit=1
              $region53: #{upsample_forward.1} parent=51 // loop_pre_header
                _
              $region54: #{upsample_forward.1} parent=51 // loop_header
                %s1414 = sphi 0, %s1418
                %p1415 = scmp.ge.s32.totalorder %s1414, 1
                %s1419 = sphi %s1395, %s1395
                %s1420 = sphi %s1404, %s1404
              $region55: #{upsample_forward.1} parent=51 // loop_header_branch
                %1417 = sbr.rel (%p1415) target = $region59
              $region56: #{upsample_forward.1} parent=51 // loop_body
                %v1421 = vld [vmem:[%s1419] sm:%s1412]
                %1422 = vst [vmem:[%s1420] sm:%s1412] %v1421
                %v1423 = vld [vmem:[%s1419 + $0x8] sm:%s1412]
                %1424 = vst [vmem:[%s1420 + $0x8] sm:%s1412] %v1423
                %v1425 = vld [vmem:[%s1419 + $0x10] sm:%s1412]
                %1426 = vst [vmem:[%s1420 + $0x10] sm:%s1412] %v1425
                %v1427 = vld [vmem:[%s1419 + $0x18] sm:%s1412]
                %1428 = vst [vmem:[%s1420 + $0x18] sm:%s1412] %v1427
                %v1429 = vld [vmem:[%s1419 + $0x20] sm:%s1412]
                %1430 = vst [vmem:[%s1420 + $0x20] sm:%s1412] %v1429
                %v1431 = vld [vmem:[%s1419 + $0x28] sm:%s1412]
                %1432 = vst [vmem:[%s1420 + $0x28] sm:%s1412] %v1431
                %v1433 = vld [vmem:[%s1419 + $0x30] sm:%s1412]
                %1434 = vst [vmem:[%s1420 + $0x30] sm:%s1412] %v1433
                %v1435 = vld [vmem:[%s1419 + $0x38] sm:%s1412]
                %1436 = vst [vmem:[%s1420 + $0x38] sm:%s1412] %v1435
                %v1437 = vld [vmem:[%s1419 + $0x40] sm:%s1412]
                %1438 = vst [vmem:[%s1420 + $0x40] sm:%s1412] %v1437
                %v1439 = vld [vmem:[%s1419 + $0x48] sm:%s1412]
                %1440 = vst [vmem:[%s1420 + $0x48] sm:%s1412] %v1439
                %v1441 = vld [vmem:[%s1419 + $0x50] sm:%s1412]
                %1442 = vst [vmem:[%s1420 + $0x50] sm:%s1412] %v1441
                %v1443 = vld [vmem:[%s1419 + $0x58] sm:%s1412]
                %1444 = vst [vmem:[%s1420 + $0x58] sm:%s1412] %v1443
                %v1445 = vld [vmem:[%s1419 + $0x60] sm:%s1412]
                %1446 = vst [vmem:[%s1420 + $0x60] sm:%s1412] %v1445
                %v1447 = vld [vmem:[%s1419 + $0x68] sm:%s1412]
                %1448 = vst [vmem:[%s1420 + $0x68] sm:%s1412] %v1447
                %v1449 = vld [vmem:[%s1419 + $0x70] sm:%s1412]
                %1450 = vst [vmem:[%s1420 + $0x70] sm:%s1412] %v1449
                %v1451 = vld [vmem:[%s1419 + $0x78] sm:%s1412]
                %1452 = vst [vmem:[%s1420 + $0x78] sm:%s1412] %v1451
                %v1453 = vld [vmem:[%s1419 + $0x80] sm:%s1412]
                %1454 = vst [vmem:[%s1420 + $0x100] sm:%s1412] %v1453
                %v1455 = vld [vmem:[%s1419 + $0x88] sm:%s1412]
                %1456 = vst [vmem:[%s1420 + $0x108] sm:%s1412] %v1455
                %v1457 = vld [vmem:[%s1419 + $0x90] sm:%s1412]
                %1458 = vst [vmem:[%s1420 + $0x110] sm:%s1412] %v1457
                %v1459 = vld [vmem:[%s1419 + $0x98] sm:%s1412]
                %1460 = vst [vmem:[%s1420 + $0x118] sm:%s1412] %v1459
                %v1461 = vld [vmem:[%s1419 + $0xa0] sm:%s1412]
                %1462 = vst [vmem:[%s1420 + $0x120] sm:%s1412] %v1461
                %v1463 = vld [vmem:[%s1419 + $0xa8] sm:%s1412]
                %1464 = vst [vmem:[%s1420 + $0x128] sm:%s1412] %v1463
                %v1465 = vld [vmem:[%s1419 + $0xb0] sm:%s1412]
                %1466 = vst [vmem:[%s1420 + $0x130] sm:%s1412] %v1465
                %v1467 = vld [vmem:[%s1419 + $0xb8] sm:%s1412]
                %1468 = vst [vmem:[%s1420 + $0x138] sm:%s1412] %v1467
                %v1469 = vld [vmem:[%s1419 + $0xc0] sm:%s1412]
                %1470 = vst [vmem:[%s1420 + $0x140] sm:%s1412] %v1469
                %v1471 = vld [vmem:[%s1419 + $0xc8] sm:%s1412]
                %1472 = vst [vmem:[%s1420 + $0x148] sm:%s1412] %v1471
                %v1473 = vld [vmem:[%s1419 + $0xd0] sm:%s1412]
                %1474 = vst [vmem:[%s1420 + $0x150] sm:%s1412] %v1473
                %v1475 = vld [vmem:[%s1419 + $0xd8] sm:%s1412]
                %1476 = vst [vmem:[%s1420 + $0x158] sm:%s1412] %v1475
                %v1477 = vld [vmem:[%s1419 + $0xe0] sm:%s1412]
                %1478 = vst [vmem:[%s1420 + $0x160] sm:%s1412] %v1477
                %v1479 = vld [vmem:[%s1419 + $0xe8] sm:%s1412]
                %1480 = vst [vmem:[%s1420 + $0x168] sm:%s1412] %v1479
                %v1481 = vld [vmem:[%s1419 + $0xf0] sm:%s1412]
                %1482 = vst [vmem:[%s1420 + $0x170] sm:%s1412] %v1481
                %v1483 = vld [vmem:[%s1419 + $0xf8] sm:%s1412]
                %1484 = vst [vmem:[%s1420 + $0x178] sm:%s1412] %v1483
              $region57: #{upsample_forward.1} parent=51 // loop_footer
                %s1418 = sadd.s32 1, %s1414
              $region58: #{upsample_forward.1} parent=51 // loop_footer_branch
                %1413 = sbr.rel target = $region54
              $region59: #{upsample_forward.1} parent=51 // loop_exit
                _
            $region52: #{upsample_forward.1} parent=43 // pred_fallthru
              _
          $region44: #{upsample_forward.1} parent=39 // pred_fallthru
            _
          %1561 = vnop
        $region40: #{upsample_forward.1} parent=35 // pred_fallthru
          _
      $region36: #{upsample_forward.1} parent=5 // pred_fallthru
        _
      %p1562 = scmp.le.s32.totalorder 2, %s10
      // Predicated region
      $region75: #{upsample_forward.1} parent=5 // pred_check
        %p1563 = pneg %p1562
      $region76: #{upsample_forward.1} parent=5 // pred_check_branch
        %1565 = sbr.rel (%p1563) target = $region78
      $region77: #{upsample_forward.1} parent=5 // pred_region
        %s1566 = ssub.s32 %s10, 2
        // Predicated region
        $region79: #{upsample_forward.1} parent=77 // pred_check
          %p1567 = pneg %p166
        $region80: #{upsample_forward.1} parent=77 // pred_check_branch
          %1569 = sbr.rel (%p1567) target = $region82
        $region81: #{upsample_forward.1} parent=77 // pred_region
          %s1570 = sand.u32 %s151, 1
          %s1571 = sand.u32 %s151, 1
          %s1572 = smul.addr %s1571, 256
          %s1573 = scalar_lea.vmem [#allocation3], %s1572
        $region82: #{upsample_forward.1} parent=77 // pred_fallthru
          _
      $region78: #{upsample_forward.1} parent=5 // pred_fallthru
        _
    $region6: #{upsample_forward.1} parent=1 // loop_footer
      %s14 = sadd.s32 1, %s10
    $region7: #{upsample_forward.1} parent=1 // loop_footer_branch
      %9 = sbr.rel target = $region3
    $region8: #{upsample_forward.1} parent=1 // loop_exit
      _

</llo_original>
